<compile_context>
chip_gen: v7x
topology: tpu7x:2x2x1
jax: 0.10.0
libtpu: 0.0.40
codegen_flags: <defaults>
</compile_context>

<pallas_src>
import functools

import numpy as np
import jax
import jax.numpy as jnp
from jax.experimental import pallas as pl
from jax.experimental.pallas import tpu as pltpu

EPS = 1e-5
VMEM_LIMIT = 32 * 1024 * 1024


# ----------------------------- in-kernel helpers ---------------------------- #

def _lane_col(lane, W):
    """Column index (w) for a flattened-spatial lane iota."""
    if W & (W - 1) == 0:
        return jnp.bitwise_and(lane, W - 1)
    return lane % W


def _tap(x, dh, dw, lane, col, H, W):
    """tap[c, h*W+w] = x[c, (h+dh)*W + (w+dw)] if (h+dh, w+dw) in bounds else 0.

    x is (Cin, H*W) lane-dense; shift is a lane roll (XLU) + border masks (VPU).
    """
    HW = H * W
    d = dh * W + dw
    t = x if d == 0 else pltpu.roll(x, shift=(-d) % HW, axis=1)
    conds = []
    if dh < 0:
        conds.append(lane >= (-dh) * W)
    if dh > 0:
        conds.append(lane < (H - dh) * W)
    if dw < 0:
        conds.append(col >= -dw)
    if dw > 0:
        conds.append(col < W - dw)
    if conds:
        valid = functools.reduce(jnp.logical_and, conds)
        t = jnp.where(valid, t, jnp.zeros_like(t))
    return t


# ----------------------------- Pallas kernels ------------------------------- #

def _conv3x3_kernel(x_ref, w_ref, s_ref, t_ref, y_ref, stats_ref, slab_ref,
                    *, fuse_bn_relu, H, W):
    """3x3 conv (pad=1) on one batch element, lane-dense, tap-folded into one matmul.

    Optionally applies relu(x*scale + shift) to the input first (fused BN+ReLU of the
    previous layer).  Also emits per-batch-element BN partials (sum, centered sumsq).
    """
    cin = x_ref.shape[1]
    HW = H * W
    x = x_ref[0]                                             # (cin, HW) lane-dense
    if fuse_bn_relu:
        x = jnp.maximum(x * s_ref[...] + t_ref[...], 0.0)

    lane = jax.lax.broadcasted_iota(jnp.int32, (cin, HW), 1)
    col = _lane_col(lane, W)

    # im2col slab: row (kh*3+kw)*cin + ci holds the (kh-1, kw-1)-shifted input channel ci.
    idx = 0
    for dh in (-1, 0, 1):
        for dw in (-1, 0, 1):
            slab_ref[idx * cin:(idx + 1) * cin, :] = _tap(x, dh, dw, lane, col, H, W)
            idx += 1

    # Single MXU matmul: (cout, 9*cin) x (9*cin, HW) -> (cout, HW), lane-dense output.
    acc = jnp.dot(w_ref[...], slab_ref[...], preferred_element_type=jnp.float32)
    y_ref[0] = acc

    # Per-batch-element BN partials: per-channel sum and centered sum of squares.
    s = jnp.sum(acc, axis=1, keepdims=True)                  # (cout, 1)
    m = s * (1.0 / HW)
    dev = acc - m
    m2 = jnp.sum(dev * dev, axis=1, keepdims=True)
    stats_ref[0] = jnp.concatenate([s, m2], axis=1)          # single (cout, 2) store


def _upconv2x_kernel(y_ref, s_ref, t_ref, w_ref, b_ref, o_ref, slab_ref, *, H, W):
    """Fused BN+ReLU + phase-decomposed ConvTranspose2d(k=3,s=2,p=1,op=1) + bias + ReLU.

    The 4 compact-activation sources (v00, v01, v10, v11) are packed along sublanes and
    contracted with one (4*cout, 4*cin) matrix so all 4 sub-pixel phases come out of one
    matmul, already packed as rows [p00; p01; p10; p11] of a lane-dense (4*cout, HW) tile.
    """
    cin = y_ref.shape[1]
    HW = H * W
    a = jnp.maximum(y_ref[0] * s_ref[...] + t_ref[...], 0.0)     # fused BN+ReLU, (cin, HW)

    lane = jax.lax.broadcasted_iota(jnp.int32, (cin, HW), 1)
    col = _lane_col(lane, W)

    for i, (dh, dw) in enumerate(((0, 0), (0, 1), (1, 0), (1, 1))):
        slab_ref[i * cin:(i + 1) * cin, :] = _tap(a, dh, dw, lane, col, H, W)

    res = jnp.dot(w_ref[...], slab_ref[...], preferred_element_type=jnp.float32)
    o_ref[0] = jnp.maximum(res + b_ref[...], 0.0)                # one dense (4*cout, HW) store


# ------------------------------ wrappers ------------------------------------ #

def conv3x3_bn_stats(x, w_flat, scale, shift, *, fuse_bn_relu, H, W):
    """x:(N,Cin,H*W); w_flat:(Cout,9*Cin); scale/shift:(Cin,1).
    Returns y:(N,Cout,H*W) and stats:(N,Cout,2)."""
    N, cin, HW = x.shape
    cout = w_flat.shape[0]
    kernel = functools.partial(_conv3x3_kernel, fuse_bn_relu=fuse_bn_relu, H=H, W=W)
    return pl.pallas_call(
        kernel,
        out_shape=(jax.ShapeDtypeStruct((N, cout, HW), jnp.float32),
                   jax.ShapeDtypeStruct((N, cout, 2), jnp.float32)),
        grid_spec=pltpu.PrefetchScalarGridSpec(
            num_scalar_prefetch=0,
            grid=(N,),
            in_specs=[
                pl.BlockSpec((1, cin, HW), lambda n: (n, 0, 0)),
                pl.BlockSpec((cout, 9 * cin), lambda n: (0, 0)),
                pl.BlockSpec((cin, 1), lambda n: (0, 0)),
                pl.BlockSpec((cin, 1), lambda n: (0, 0)),
            ],
            out_specs=[
                pl.BlockSpec((1, cout, HW), lambda n: (n, 0, 0)),
                pl.BlockSpec((1, cout, 2), lambda n: (n, 0, 0)),
            ],
            scratch_shapes=[pltpu.VMEM((9 * cin, HW), jnp.float32)],
        ),
        compiler_params=pltpu.CompilerParams(
            dimension_semantics=("parallel",),
            vmem_limit_bytes=VMEM_LIMIT,
        ),
    )(x, w_flat, scale, shift)


def upconv2x(y, scale, shift, w_up, bias_tiled, *, H, W):
    """y:(N,Cin,H*W) pre-BN activations; returns packed phases (N, 4*Cout, H*W)."""
    N, cin, HW = y.shape
    four_cout = w_up.shape[0]
    return pl.pallas_call(
        functools.partial(_upconv2x_kernel, H=H, W=W),
        out_shape=jax.ShapeDtypeStruct((N, four_cout, HW), jnp.float32),
        grid_spec=pltpu.PrefetchScalarGridSpec(
            num_scalar_prefetch=0,
            grid=(N,),
            in_specs=[
                pl.BlockSpec((1, cin, HW), lambda n: (n, 0, 0)),
                pl.BlockSpec((cin, 1), lambda n: (0, 0)),
                pl.BlockSpec((cin, 1), lambda n: (0, 0)),
                pl.BlockSpec((four_cout, 4 * cin), lambda n: (0, 0)),
                pl.BlockSpec((four_cout, 1), lambda n: (0, 0)),
            ],
            out_specs=pl.BlockSpec((1, four_cout, HW), lambda n: (n, 0, 0)),
            scratch_shapes=[pltpu.VMEM((4 * cin, HW), jnp.float32)],
        ),
        compiler_params=pltpu.CompilerParams(
            dimension_semantics=("parallel",),
            vmem_limit_bytes=VMEM_LIMIT,
        ),
    )(y, scale, shift, w_up, bias_tiled)


# ------------------------------- JAX glue ----------------------------------- #

def _bn_scale_shift(stats, gamma, beta, hw):
    """Combine per-batch-element (sum, centered sumsq) into BN affine (scale, shift)
    using Chan's parallel-variance formula (no E[x^2]-E[x]^2 cancellation)."""
    n = stats.shape[0]
    count = n * hw
    s_n = stats[:, :, 0]                         # (N, C)
    m2_n = stats[:, :, 1]                        # (N, C)
    mean = jnp.sum(s_n, axis=0) / count
    m_n = s_n / hw
    m2 = jnp.sum(m2_n, axis=0) + hw * jnp.sum((m_n - mean) ** 2, axis=0)
    var = m2 / count                             # biased variance (BN training mode)
    scale = gamma / jnp.sqrt(var + EPS)
    shift = beta - mean * scale
    return scale.reshape(-1, 1), shift.reshape(-1, 1)


def _upconv_weight(wt):
    """(Cin, Cout, 3, 3) ConvTranspose2d weight -> (4*Cout, 4*Cin) phase/source matrix.

    Row = phase*Cout + o (phase = py*2+px); column = src*Cin + c, sources v00,v01,v10,v11.
    out[o, 2h+py, 2w+px] = sum_src W[phase, src] @ v_src[:, h*W+w]  (+ bias, ReLU).
    """
    cin, cout = wt.shape[0], wt.shape[1]
    mapping = {
        (0, 0): (1, 1),
        (1, 0): (1, 2), (1, 1): (1, 0),
        (2, 0): (2, 1), (2, 2): (0, 1),
        (3, 0): (2, 2), (3, 1): (2, 0), (3, 2): (0, 2), (3, 3): (0, 0),
    }
    wm = jnp.zeros((4 * cout, 4 * cin), jnp.float32)
    for (ph, src), (kh, kw) in mapping.items():
        wm = wm.at[ph * cout:(ph + 1) * cout, src * cin:(src + 1) * cin].set(
            wt[:, :, kh, kw].T)
    return wm


def upsample_forward(x_nchw, p):
    N, c2, H, W = x_nchw.shape
    C = c2 // 2
    HW = H * W
    # NCHW -> (N, C, H*W) is a pure reshape: channels in sublanes, spatial in lanes.
    x = x_nchw.reshape(N, c2, HW).astype(jnp.float32)

    # Conv weights folded to (cout, 9*cin); conv biases dropped (cancelled by training-mode BN).
    w1 = jnp.transpose(p["w1"], (0, 2, 3, 1)).reshape(C, 9 * c2)
    w2 = jnp.transpose(p["w2"], (0, 2, 3, 1)).reshape(C, 9 * C)
    wup = _upconv_weight(p["wt"])
    bup = jnp.tile(p["bt"], 4).reshape(-1, 1)                 # bias per (phase, cout) row

    ones = jnp.ones((c2, 1), jnp.float32)
    zeros = jnp.zeros((c2, 1), jnp.float32)

    # Conv1 (+ per-element BN partials).
    y1, st1 = conv3x3_bn_stats(x, w1, ones, zeros, fuse_bn_relu=False, H=H, W=W)
    s1, t1 = _bn_scale_shift(st1, p["g1"], p["be1"], HW)

    # Conv2 with BN+ReLU of y1 fused in-kernel (+ BN partials).
    y2, st2 = conv3x3_bn_stats(y1, w2, s1, t1, fuse_bn_relu=True, H=H, W=W)
    s2, t2 = _bn_scale_shift(st2, p["g2"], p["be2"], HW)

    # BN+ReLU of y2 fused with phase-decomposed transposed conv (+bias, ReLU).
    ph = upconv2x(y2, s2, t2, wup, bup, H=H, W=W)             # (N, 4*(C//2), HW)

    # Interleave phases + lane-dense reshape to NCHW in one XLA transpose.
    ph = ph.reshape(N, 2, 2, C // 2, H, W)                    # [n, py, px, o, h, w]
    out = jnp.transpose(ph, (0, 3, 4, 1, 5, 2)).reshape(N, C // 2, 2 * H, 2 * W)
    return out


# --------------------------- numpy reference -------------------------------- #

def ref_forward(x, p):
    x = np.asarray(x, np.float32)

    def conv2d(x, w, b):
        N, Cin, H, W = x.shape
        Cout = w.shape[0]
        xp = np.pad(x, ((0, 0), (0, 0), (1, 1), (1, 1)))
        out = np.zeros((N, Cout, H, W), np.float32)
        for kh in range(3):
            for kw in range(3):
                out += np.einsum("ncij,oc->noij", xp[:, :, kh:kh + H, kw:kw + W], w[:, :, kh, kw])
        return out + b[None, :, None, None]

    def bnrelu(x, g, be):
        m = x.mean(axis=(0, 2, 3), keepdims=True)
        v = x.var(axis=(0, 2, 3), keepdims=True)
        y = (x - m) / np.sqrt(v + EPS) * g[None, :, None, None] + be[None, :, None, None]
        return np.maximum(y, 0.0)

    def conv_transpose(x, w, b):
        N, Cin, H, W = x.shape
        Cout = w.shape[1]
        full = np.zeros((N, Cout, 2 * H + 1, 2 * W + 1), np.float32)
        for kh in range(3):
            for kw in range(3):
                tmp = np.einsum("ncij,co->noij", x, w[:, :, kh, kw])
                full[:, :, kh:kh + 2 * H:2, kw:kw + 2 * W:2] += tmp
        return full[:, :, 1:1 + 2 * H, 1:1 + 2 * W] + b[None, :, None, None]

    y = bnrelu(conv2d(x, np.asarray(p["w1"]), np.asarray(p["b1"])),
               np.asarray(p["g1"]), np.asarray(p["be1"]))
    y = bnrelu(conv2d(y, np.asarray(p["w2"]), np.asarray(p["b2"])),
               np.asarray(p["g2"]), np.asarray(p["be2"]))
    y = conv_transpose(y, np.asarray(p["wt"]), np.asarray(p["bt"]))
    return np.maximum(y, 0.0)


# ---------------------------------- main ------------------------------------ #

if __name__ == "__main__":
    channels = 4                     # Upsample(channels=4) -> input has 2*4 = 8 channels
    N, H, W = 2, 16, 16

    keys = jax.random.split(jax.random.PRNGKey(0), 11)
    p = {
        "w1": 0.1 * jax.random.normal(keys[0], (channels, 2 * channels, 3, 3), jnp.float32),
        "b1": 0.05 * jax.random.normal(keys[1], (channels,), jnp.float32),
        "g1": 1.0 + 0.1 * jax.random.normal(keys[2], (channels,), jnp.float32),
        "be1": 0.05 * jax.random.normal(keys[3], (channels,), jnp.float32),
        "w2": 0.1 * jax.random.normal(keys[4], (channels, channels, 3, 3), jnp.float32),
        "b2": 0.05 * jax.random.normal(keys[5], (channels,), jnp.float32),
        "g2": 1.0 + 0.1 * jax.random.normal(keys[6], (channels,), jnp.float32),
        "be2": 0.05 * jax.random.normal(keys[7], (channels,), jnp.float32),
        "wt": 0.1 * jax.random.normal(keys[8], (channels, channels // 2, 3, 3), jnp.float32),
        "bt": 0.05 * jax.random.normal(keys[9], (channels // 2,), jnp.float32),
    }
    x = jax.random.normal(keys[10], (N, 2 * channels, H, W), jnp.float32)

    out = jax.jit(upsample_forward)(x, p)
    out = jax.block_until_ready(out)

    assert out.shape == (N, channels // 2, 2 * H, 2 * W), out.shape
    ref = ref_forward(np.asarray(x), p)
    np.testing.assert_allclose(np.asarray(out), ref, rtol=1e-2, atol=1e-2)

    print("KERNEL_OK")
</pallas_src>

<mosaic_0001>
module attributes {stable_mosaic.version = 11 : i64} {
  func.func @_conv3x3_kernel(%arg0: i32, %arg1: memref<1x8x256xf32, #tpu.memory_space<vmem>>, %arg2: memref<4x72xf32, #tpu.memory_space<vmem>>, %arg3: memref<8x1xf32, #tpu.memory_space<vmem>>, %arg4: memref<8x1xf32, #tpu.memory_space<vmem>>, %arg5: memref<1x4x256xf32, #tpu.memory_space<vmem>>, %arg6: memref<1x4x2xf32, #tpu.memory_space<vmem>>, %arg7: memref<72x256xf32, #tpu.memory_space<vmem>>) attributes {dimension_semantics = [#tpu.dimension_semantics<parallel>], iteration_bounds = array<i64: 2>, scalar_prefetch = 0 : i64, scratch_operands = 1 : i64, tpu.core_type = #tpu.core_type<tc>, window_params = [{transform_indices = @transform_0, window_bounds = array<i64: 1, 8, 256>}, {pipeline_mode = #tpu.pipeline_mode<synchronous>, transform_indices = @transform_1, window_bounds = array<i64: 4, 72>}, {pipeline_mode = #tpu.pipeline_mode<synchronous>, transform_indices = @transform_2, window_bounds = array<i64: 8, 1>}, {pipeline_mode = #tpu.pipeline_mode<synchronous>, transform_indices = @transform_3, window_bounds = array<i64: 8, 1>}, {transform_indices = @transform_4, window_bounds = array<i64: 1, 4, 256>}, {transform_indices = @transform_5, window_bounds = array<i64: 1, 4, 2>}]} {
    %c0 = arith.constant 0 : index
    %c0_0 = arith.constant 0 : index
    %c0_1 = arith.constant 0 : index
    %0 = vector.load %arg1[%c0, %c0_0, %c0_1] : memref<1x8x256xf32, #tpu.memory_space<vmem>>, vector<1x8x256xf32>
    %1 = vector.shape_cast %0 : vector<1x8x256xf32> to vector<8x256xf32>
    %2 = tpu.iota {dimensions = array<i32: 1>} : vector<8x256xi32>
    %c15_i32 = arith.constant 15 : i32
    %3 = vector.broadcast %c15_i32 : i32 to vector<8x256xi32>
    %4 = arith.andi %2, %3 : vector<8x256xi32>
    %c17_i32 = arith.constant 17 : i32
    %5 = tpu.dynamic_rotate %1 by %c17_i32 dim 1 : vector<8x256xf32>, i32 -> vector<8x256xf32>
    %c16_i32 = arith.constant 16 : i32
    %6 = vector.broadcast %c16_i32 : i32 to vector<8x256xi32>
    %7 = arith.cmpi sge, %2, %6 : vector<8x256xi32>
    %c1_i32 = arith.constant 1 : i32
    %8 = vector.broadcast %c1_i32 : i32 to vector<8x256xi32>
    %9 = arith.cmpi sge, %4, %8 : vector<8x256xi32>
    %10 = arith.andi %7, %9 : vector<8x256xi1>
    %cst = arith.constant 0.000000e+00 : f32
    %11 = vector.broadcast %cst : f32 to vector<8x256xf32>
    %12 = arith.select %10, %5, %11 : vector<8x256xi1>, vector<8x256xf32>
    %c0_2 = arith.constant 0 : index
    %c0_3 = arith.constant 0 : index
    %13 = vector.load %arg7[%c0_2, %c0_3] : memref<72x256xf32, #tpu.memory_space<vmem>>, vector<8x256xf32>
    tpu.vector_store %arg7[%c0_2, %c0_3], %12 {strides = array<i32>} : memref<72x256xf32, #tpu.memory_space<vmem>>, vector<8x256xf32>,
    %c16_i32_4 = arith.constant 16 : i32
    %14 = tpu.dynamic_rotate %1 by %c16_i32_4 dim 1 : vector<8x256xf32>, i32 -> vector<8x256xf32>
    %c16_i32_5 = arith.constant 16 : i32
    %15 = vector.broadcast %c16_i32_5 : i32 to vector<8x256xi32>
    %16 = arith.cmpi sge, %2, %15 : vector<8x256xi32>
    %cst_6 = arith.constant 0.000000e+00 : f32
    %17 = vector.broadcast %cst_6 : f32 to vector<8x256xf32>
    %18 = arith.select %16, %14, %17 : vector<8x256xi1>, vector<8x256xf32>
    %c8 = arith.constant 8 : index
    %c0_7 = arith.constant 0 : index
    %19 = vector.load %arg7[%c8, %c0_7] : memref<72x256xf32, #tpu.memory_space<vmem>>, vector<8x256xf32>
    tpu.vector_store %arg7[%c8, %c0_7], %18 {strides = array<i32>} : memref<72x256xf32, #tpu.memory_space<vmem>>, vector<8x256xf32>,
    %c15_i32_8 = arith.constant 15 : i32
    %20 = tpu.dynamic_rotate %1 by %c15_i32_8 dim 1 : vector<8x256xf32>, i32 -> vector<8x256xf32>
    %c16_i32_9 = arith.constant 16 : i32
    %21 = vector.broadcast %c16_i32_9 : i32 to vector<8x256xi32>
    %22 = arith.cmpi sge, %2, %21 : vector<8x256xi32>
    %c15_i32_10 = arith.constant 15 : i32
    %23 = vector.broadcast %c15_i32_10 : i32 to vector<8x256xi32>
    %24 = arith.cmpi slt, %4, %23 : vector<8x256xi32>
    %25 = arith.andi %22, %24 : vector<8x256xi1>
    %cst_11 = arith.constant 0.000000e+00 : f32
    %26 = vector.broadcast %cst_11 : f32 to vector<8x256xf32>
    %27 = arith.select %25, %20, %26 : vector<8x256xi1>, vector<8x256xf32>
    %c16 = arith.constant 16 : index
    %c0_12 = arith.constant 0 : index
    %28 = vector.load %arg7[%c16, %c0_12] : memref<72x256xf32, #tpu.memory_space<vmem>>, vector<8x256xf32>
    tpu.vector_store %arg7[%c16, %c0_12], %27 {strides = array<i32>} : memref<72x256xf32, #tpu.memory_space<vmem>>, vector<8x256xf32>,
    %c1_i32_13 = arith.constant 1 : i32
    %29 = tpu.dynamic_rotate %1 by %c1_i32_13 dim 1 : vector<8x256xf32>, i32 -> vector<8x256xf32>
    %c1_i32_14 = arith.constant 1 : i32
    %30 = vector.broadcast %c1_i32_14 : i32 to vector<8x256xi32>
    %31 = arith.cmpi sge, %4, %30 : vector<8x256xi32>
    %cst_15 = arith.constant 0.000000e+00 : f32
    %32 = vector.broadcast %cst_15 : f32 to vector<8x256xf32>
    %33 = arith.select %31, %29, %32 : vector<8x256xi1>, vector<8x256xf32>
    %c24 = arith.constant 24 : index
    %c0_16 = arith.constant 0 : index
    %34 = vector.load %arg7[%c24, %c0_16] : memref<72x256xf32, #tpu.memory_space<vmem>>, vector<8x256xf32>
    tpu.vector_store %arg7[%c24, %c0_16], %33 {strides = array<i32>} : memref<72x256xf32, #tpu.memory_space<vmem>>, vector<8x256xf32>,
    %c32 = arith.constant 32 : index
    %c0_17 = arith.constant 0 : index
    %35 = vector.load %arg7[%c32, %c0_17] : memref<72x256xf32, #tpu.memory_space<vmem>>, vector<8x256xf32>
    tpu.vector_store %arg7[%c32, %c0_17], %1 {strides = array<i32>} : memref<72x256xf32, #tpu.memory_space<vmem>>, vector<8x256xf32>,
    %c255_i32 = arith.constant 255 : i32
    %36 = tpu.dynamic_rotate %1 by %c255_i32 dim 1 : vector<8x256xf32>, i32 -> vector<8x256xf32>
    %c15_i32_18 = arith.constant 15 : i32
    %37 = vector.broadcast %c15_i32_18 : i32 to vector<8x256xi32>
    %38 = arith.cmpi slt, %4, %37 : vector<8x256xi32>
    %cst_19 = arith.constant 0.000000e+00 : f32
    %39 = vector.broadcast %cst_19 : f32 to vector<8x256xf32>
    %40 = arith.select %38, %36, %39 : vector<8x256xi1>, vector<8x256xf32>
    %c40 = arith.constant 40 : index
    %c0_20 = arith.constant 0 : index
    %41 = vector.load %arg7[%c40, %c0_20] : memref<72x256xf32, #tpu.memory_space<vmem>>, vector<8x256xf32>
    tpu.vector_store %arg7[%c40, %c0_20], %40 {strides = array<i32>} : memref<72x256xf32, #tpu.memory_space<vmem>>, vector<8x256xf32>,
    %c241_i32 = arith.constant 241 : i32
    %42 = tpu.dynamic_rotate %1 by %c241_i32 dim 1 : vector<8x256xf32>, i32 -> vector<8x256xf32>
    %c240_i32 = arith.constant 240 : i32
    %43 = vector.broadcast %c240_i32 : i32 to vector<8x256xi32>
    %44 = arith.cmpi slt, %2, %43 : vector<8x256xi32>
    %c1_i32_21 = arith.constant 1 : i32
    %45 = vector.broadcast %c1_i32_21 : i32 to vector<8x256xi32>
    %46 = arith.cmpi sge, %4, %45 : vector<8x256xi32>
    %47 = arith.andi %44, %46 : vector<8x256xi1>
    %cst_22 = arith.constant 0.000000e+00 : f32
    %48 = vector.broadcast %cst_22 : f32 to vector<8x256xf32>
    %49 = arith.select %47, %42, %48 : vector<8x256xi1>, vector<8x256xf32>
    %c48 = arith.constant 48 : index
    %c0_23 = arith.constant 0 : index
    %50 = vector.load %arg7[%c48, %c0_23] : memref<72x256xf32, #tpu.memory_space<vmem>>, vector<8x256xf32>
    tpu.vector_store %arg7[%c48, %c0_23], %49 {strides = array<i32>} : memref<72x256xf32, #tpu.memory_space<vmem>>, vector<8x256xf32>,
    %c240_i32_24 = arith.constant 240 : i32
    %51 = tpu.dynamic_rotate %1 by %c240_i32_24 dim 1 : vector<8x256xf32>, i32 -> vector<8x256xf32>
    %c240_i32_25 = arith.constant 240 : i32
    %52 = vector.broadcast %c240_i32_25 : i32 to vector<8x256xi32>
    %53 = arith.cmpi slt, %2, %52 : vector<8x256xi32>
    %cst_26 = arith.constant 0.000000e+00 : f32
    %54 = vector.broadcast %cst_26 : f32 to vector<8x256xf32>
    %55 = arith.select %53, %51, %54 : vector<8x256xi1>, vector<8x256xf32>
    %c56 = arith.constant 56 : index
    %c0_27 = arith.constant 0 : index
    %56 = vector.load %arg7[%c56, %c0_27] : memref<72x256xf32, #tpu.memory_space<vmem>>, vector<8x256xf32>
    tpu.vector_store %arg7[%c56, %c0_27], %55 {strides = array<i32>} : memref<72x256xf32, #tpu.memory_space<vmem>>, vector<8x256xf32>,
    %c239_i32 = arith.constant 239 : i32
    %57 = tpu.dynamic_rotate %1 by %c239_i32 dim 1 : vector<8x256xf32>, i32 -> vector<8x256xf32>
    %c240_i32_28 = arith.constant 240 : i32
    %58 = vector.broadcast %c240_i32_28 : i32 to vector<8x256xi32>
    %59 = arith.cmpi slt, %2, %58 : vector<8x256xi32>
    %c15_i32_29 = arith.constant 15 : i32
    %60 = vector.broadcast %c15_i32_29 : i32 to vector<8x256xi32>
    %61 = arith.cmpi slt, %4, %60 : vector<8x256xi32>
    %62 = arith.andi %59, %61 : vector<8x256xi1>
    %cst_30 = arith.constant 0.000000e+00 : f32
    %63 = vector.broadcast %cst_30 : f32 to vector<8x256xf32>
    %64 = arith.select %62, %57, %63 : vector<8x256xi1>, vector<8x256xf32>
    %c64 = arith.constant 64 : index
    %c0_31 = arith.constant 0 : index
    %65 = vector.load %arg7[%c64, %c0_31] : memref<72x256xf32, #tpu.memory_space<vmem>>, vector<8x256xf32>
    tpu.vector_store %arg7[%c64, %c0_31], %64 {strides = array<i32>} : memref<72x256xf32, #tpu.memory_space<vmem>>, vector<8x256xf32>,
    %c0_32 = arith.constant 0 : index
    %c0_33 = arith.constant 0 : index
    %66 = vector.load %arg2[%c0_32, %c0_33] : memref<4x72xf32, #tpu.memory_space<vmem>>, vector<4x72xf32>
    %c0_34 = arith.constant 0 : index
    %c0_35 = arith.constant 0 : index
    %67 = vector.load %arg7[%c0_34, %c0_35] : memref<72x256xf32, #tpu.memory_space<vmem>>, vector<72x256xf32>
    %cst_36 = arith.constant dense<0.000000e+00> : vector<4x256xf32>
    %68 = tpu.matmul %66, %67, %cst_36 {dimension_numbers = #tpu.dot_dimension_numbers<[1], [0], [0], [1], [0, 0, 1, 1], [], []>} : vector<4x72xf32>, vector<72x256xf32>, vector<4x256xf32> -> vector<4x256xf32>
    %c0_37 = arith.constant 0 : index
    %c0_38 = arith.constant 0 : index
    %c0_39 = arith.constant 0 : index
    %69 = vector.load %arg5[%c0_37, %c0_38, %c0_39] : memref<1x4x256xf32, #tpu.memory_space<vmem>>, vector<1x4x256xf32>
    %70 = vector.shape_cast %69 : vector<1x4x256xf32> to vector<4x256xf32>
    %71 = vector.shape_cast %68 : vector<4x256xf32> to vector<1x4x256xf32>
    tpu.vector_store %arg5[%c0_37, %c0_38, %c0_39], %71 {strides = array<i32>} : memref<1x4x256xf32, #tpu.memory_space<vmem>>, vector<1x4x256xf32>,
    %cst_40 = arith.constant dense<0.000000e+00> : vector<4xf32>
    %72 = vector.multi_reduction <add>, %68, %cst_40 [1] : vector<4x256xf32> to vector<4xf32>
    %73 = vector.shape_cast %72 : vector<4xf32> to vector<4x1xf32>
    %cst_41 = arith.constant 3.906250e-03 : f32
    %74 = vector.broadcast %cst_41 : f32 to vector<4x1xf32>
    %75 = arith.mulf %73, %74 : vector<4x1xf32>
    %76 = vector.broadcast %75 : vector<4x1xf32> to vector<4x256xf32>
    %77 = arith.subf %68, %76 : vector<4x256xf32>
    %78 = arith.mulf %77, %77 : vector<4x256xf32>
    %cst_42 = arith.constant dense<0.000000e+00> : vector<4xf32>
    %79 = vector.multi_reduction <add>, %78, %cst_42 [1] : vector<4x256xf32> to vector<4xf32>
    %80 = vector.shape_cast %79 : vector<4xf32> to vector<4x1xf32>
    %81 = tpu.concatenate %73, %80 in 1 : vector<4x1xf32>, vector<4x1xf32> -> vector<4x2xf32>
    %c0_43 = arith.constant 0 : index
    %c0_44 = arith.constant 0 : index
    %c0_45 = arith.constant 0 : index
    %82 = vector.load %arg6[%c0_43, %c0_44, %c0_45] : memref<1x4x2xf32, #tpu.memory_space<vmem>>, vector<1x4x2xf32>
    %83 = vector.shape_cast %82 : vector<1x4x2xf32> to vector<4x2xf32>
    %84 = vector.shape_cast %81 : vector<4x2xf32> to vector<1x4x2xf32>
    tpu.vector_store %arg6[%c0_43, %c0_44, %c0_45], %84 {strides = array<i32>} : memref<1x4x2xf32, #tpu.memory_space<vmem>>, vector<1x4x2xf32>,
    return
  }
  func.func @transform_0(%arg0: i32) -> (i32, i32, i32) {
    %c0_i32 = arith.constant 0 : i32
    %c0_i32_0 = arith.constant 0 : i32
    %c0_i32_1 = arith.constant 0 : i32
    return %arg0, %c0_i32, %c0_i32_0 : i32, i32, i32
  }
  func.func @transform_1(%arg0: i32) -> (i32, i32) {
    %c0_i32 = arith.constant 0 : i32
    %c0_i32_0 = arith.constant 0 : i32
    %c0_i32_1 = arith.constant 0 : i32
    return %c0_i32, %c0_i32_0 : i32, i32
  }
  func.func @transform_2(%arg0: i32) -> (i32, i32) {
    %c0_i32 = arith.constant 0 : i32
    %c0_i32_0 = arith.constant 0 : i32
    %c0_i32_1 = arith.constant 0 : i32
    return %c0_i32, %c0_i32_0 : i32, i32
  }
  func.func @transform_3(%arg0: i32) -> (i32, i32) {
    %c0_i32 = arith.constant 0 : i32
    %c0_i32_0 = arith.constant 0 : i32
    %c0_i32_1 = arith.constant 0 : i32
    return %c0_i32, %c0_i32_0 : i32, i32
  }
  func.func @transform_4(%arg0: i32) -> (i32, i32, i32) {
    %c0_i32 = arith.constant 0 : i32
    %c0_i32_0 = arith.constant 0 : i32
    %c0_i32_1 = arith.constant 0 : i32
    return %arg0, %c0_i32, %c0_i32_0 : i32, i32, i32
  }
  func.func @transform_5(%arg0: i32) -> (i32, i32, i32) {
    %c0_i32 = arith.constant 0 : i32
    %c0_i32_0 = arith.constant 0 : i32
    %c0_i32_1 = arith.constant 0 : i32
    return %arg0, %c0_i32, %c0_i32_0 : i32, i32, i32
  }
}

module attributes {stable_mosaic.version = 11 : i64} {
  func.func @_conv3x3_kernel(%arg0: i32, %arg1: memref<1x4x256xf32, #tpu.memory_space<vmem>>, %arg2: memref<4x36xf32, #tpu.memory_space<vmem>>, %arg3: memref<4x1xf32, #tpu.memory_space<vmem>>, %arg4: memref<4x1xf32, #tpu.memory_space<vmem>>, %arg5: memref<1x4x256xf32, #tpu.memory_space<vmem>>, %arg6: memref<1x4x2xf32, #tpu.memory_space<vmem>>, %arg7: memref<36x256xf32, #tpu.memory_space<vmem>>) attributes {dimension_semantics = [#tpu.dimension_semantics<parallel>], iteration_bounds = array<i64: 2>, scalar_prefetch = 0 : i64, scratch_operands = 1 : i64, tpu.core_type = #tpu.core_type<tc>, window_params = [{transform_indices = @transform_0, window_bounds = array<i64: 1, 4, 256>}, {pipeline_mode = #tpu.pipeline_mode<synchronous>, transform_indices = @transform_1, window_bounds = array<i64: 4, 36>}, {pipeline_mode = #tpu.pipeline_mode<synchronous>, transform_indices = @transform_2, window_bounds = array<i64: 4, 1>}, {pipeline_mode = #tpu.pipeline_mode<synchronous>, transform_indices = @transform_3, window_bounds = array<i64: 4, 1>}, {transform_indices = @transform_4, window_bounds = array<i64: 1, 4, 256>}, {transform_indices = @transform_5, window_bounds = array<i64: 1, 4, 2>}]} {
    %c0 = arith.constant 0 : index
    %c0_0 = arith.constant 0 : index
    %c0_1 = arith.constant 0 : index
    %0 = vector.load %arg1[%c0, %c0_0, %c0_1] : memref<1x4x256xf32, #tpu.memory_space<vmem>>, vector<1x4x256xf32>
    %1 = vector.shape_cast %0 : vector<1x4x256xf32> to vector<4x256xf32>
    %c0_2 = arith.constant 0 : index
    %c0_3 = arith.constant 0 : index
    %2 = vector.load %arg3[%c0_2, %c0_3] : memref<4x1xf32, #tpu.memory_space<vmem>>, vector<4x1xf32>
    %3 = vector.broadcast %2 : vector<4x1xf32> to vector<4x256xf32>
    %4 = arith.mulf %1, %3 : vector<4x256xf32>
    %c0_4 = arith.constant 0 : index
    %c0_5 = arith.constant 0 : index
    %5 = vector.load %arg4[%c0_4, %c0_5] : memref<4x1xf32, #tpu.memory_space<vmem>>, vector<4x1xf32>
    %6 = vector.broadcast %5 : vector<4x1xf32> to vector<4x256xf32>
    %7 = arith.addf %4, %6 : vector<4x256xf32>
    %cst = arith.constant 0.000000e+00 : f32
    %8 = vector.broadcast %cst : f32 to vector<4x256xf32>
    %9 = arith.maximumf %7, %8 : vector<4x256xf32>
    %10 = tpu.iota {dimensions = array<i32: 1>} : vector<4x256xi32>
    %c15_i32 = arith.constant 15 : i32
    %11 = vector.broadcast %c15_i32 : i32 to vector<4x256xi32>
    %12 = arith.andi %10, %11 : vector<4x256xi32>
    %c17_i32 = arith.constant 17 : i32
    %13 = tpu.dynamic_rotate %9 by %c17_i32 dim 1 : vector<4x256xf32>, i32 -> vector<4x256xf32>
    %c16_i32 = arith.constant 16 : i32
    %14 = vector.broadcast %c16_i32 : i32 to vector<4x256xi32>
    %15 = arith.cmpi sge, %10, %14 : vector<4x256xi32>
    %c1_i32 = arith.constant 1 : i32
    %16 = vector.broadcast %c1_i32 : i32 to vector<4x256xi32>
    %17 = arith.cmpi sge, %12, %16 : vector<4x256xi32>
    %18 = arith.andi %15, %17 : vector<4x256xi1>
    %cst_6 = arith.constant 0.000000e+00 : f32
    %19 = vector.broadcast %cst_6 : f32 to vector<4x256xf32>
    %20 = arith.select %18, %13, %19 : vector<4x256xi1>, vector<4x256xf32>
    %c0_7 = arith.constant 0 : index
    %c0_8 = arith.constant 0 : index
    %21 = vector.load %arg7[%c0_7, %c0_8] : memref<36x256xf32, #tpu.memory_space<vmem>>, vector<4x256xf32>
    tpu.vector_store %arg7[%c0_7, %c0_8], %20 {strides = array<i32>} : memref<36x256xf32, #tpu.memory_space<vmem>>, vector<4x256xf32>,
    %c16_i32_9 = arith.constant 16 : i32
    %22 = tpu.dynamic_rotate %9 by %c16_i32_9 dim 1 : vector<4x256xf32>, i32 -> vector<4x256xf32>
    %c16_i32_10 = arith.constant 16 : i32
    %23 = vector.broadcast %c16_i32_10 : i32 to vector<4x256xi32>
    %24 = arith.cmpi sge, %10, %23 : vector<4x256xi32>
    %cst_11 = arith.constant 0.000000e+00 : f32
    %25 = vector.broadcast %cst_11 : f32 to vector<4x256xf32>
    %26 = arith.select %24, %22, %25 : vector<4x256xi1>, vector<4x256xf32>
    %c4 = arith.constant 4 : index
    %c0_12 = arith.constant 0 : index
    %27 = vector.load %arg7[%c4, %c0_12] : memref<36x256xf32, #tpu.memory_space<vmem>>, vector<4x256xf32>
    tpu.vector_store %arg7[%c4, %c0_12], %26 {strides = array<i32>} : memref<36x256xf32, #tpu.memory_space<vmem>>, vector<4x256xf32>,
    %c15_i32_13 = arith.constant 15 : i32
    %28 = tpu.dynamic_rotate %9 by %c15_i32_13 dim 1 : vector<4x256xf32>, i32 -> vector<4x256xf32>
    %c16_i32_14 = arith.constant 16 : i32
    %29 = vector.broadcast %c16_i32_14 : i32 to vector<4x256xi32>
    %30 = arith.cmpi sge, %10, %29 : vector<4x256xi32>
    %c15_i32_15 = arith.constant 15 : i32
    %31 = vector.broadcast %c15_i32_15 : i32 to vector<4x256xi32>
    %32 = arith.cmpi slt, %12, %31 : vector<4x256xi32>
    %33 = arith.andi %30, %32 : vector<4x256xi1>
    %cst_16 = arith.constant 0.000000e+00 : f32
    %34 = vector.broadcast %cst_16 : f32 to vector<4x256xf32>
    %35 = arith.select %33, %28, %34 : vector<4x256xi1>, vector<4x256xf32>
    %c8 = arith.constant 8 : index
    %c0_17 = arith.constant 0 : index
    %36 = vector.load %arg7[%c8, %c0_17] : memref<36x256xf32, #tpu.memory_space<vmem>>, vector<4x256xf32>
    tpu.vector_store %arg7[%c8, %c0_17], %35 {strides = array<i32>} : memref<36x256xf32, #tpu.memory_space<vmem>>, vector<4x256xf32>,
    %c1_i32_18 = arith.constant 1 : i32
    %37 = tpu.dynamic_rotate %9 by %c1_i32_18 dim 1 : vector<4x256xf32>, i32 -> vector<4x256xf32>
    %c1_i32_19 = arith.constant 1 : i32
    %38 = vector.broadcast %c1_i32_19 : i32 to vector<4x256xi32>
    %39 = arith.cmpi sge, %12, %38 : vector<4x256xi32>
    %cst_20 = arith.constant 0.000000e+00 : f32
    %40 = vector.broadcast %cst_20 : f32 to vector<4x256xf32>
    %41 = arith.select %39, %37, %40 : vector<4x256xi1>, vector<4x256xf32>
    %c12 = arith.constant 12 : index
    %c0_21 = arith.constant 0 : index
    %42 = vector.load %arg7[%c12, %c0_21] : memref<36x256xf32, #tpu.memory_space<vmem>>, vector<4x256xf32>
    tpu.vector_store %arg7[%c12, %c0_21], %41 {strides = array<i32>} : memref<36x256xf32, #tpu.memory_space<vmem>>, vector<4x256xf32>,
    %c16 = arith.constant 16 : index
    %c0_22 = arith.constant 0 : index
    %43 = vector.load %arg7[%c16, %c0_22] : memref<36x256xf32, #tpu.memory_space<vmem>>, vector<4x256xf32>
    tpu.vector_store %arg7[%c16, %c0_22], %9 {strides = array<i32>} : memref<36x256xf32, #tpu.memory_space<vmem>>, vector<4x256xf32>,
    %c255_i32 = arith.constant 255 : i32
    %44 = tpu.dynamic_rotate %9 by %c255_i32 dim 1 : vector<4x256xf32>, i32 -> vector<4x256xf32>
    %c15_i32_23 = arith.constant 15 : i32
    %45 = vector.broadcast %c15_i32_23 : i32 to vector<4x256xi32>
    %46 = arith.cmpi slt, %12, %45 : vector<4x256xi32>
    %cst_24 = arith.constant 0.000000e+00 : f32
    %47 = vector.broadcast %cst_24 : f32 to vector<4x256xf32>
    %48 = arith.select %46, %44, %47 : vector<4x256xi1>, vector<4x256xf32>
    %c20 = arith.constant 20 : index
    %c0_25 = arith.constant 0 : index
    %49 = vector.load %arg7[%c20, %c0_25] : memref<36x256xf32, #tpu.memory_space<vmem>>, vector<4x256xf32>
    tpu.vector_store %arg7[%c20, %c0_25], %48 {strides = array<i32>} : memref<36x256xf32, #tpu.memory_space<vmem>>, vector<4x256xf32>,
    %c241_i32 = arith.constant 241 : i32
    %50 = tpu.dynamic_rotate %9 by %c241_i32 dim 1 : vector<4x256xf32>, i32 -> vector<4x256xf32>
    %c240_i32 = arith.constant 240 : i32
    %51 = vector.broadcast %c240_i32 : i32 to vector<4x256xi32>
    %52 = arith.cmpi slt, %10, %51 : vector<4x256xi32>
    %c1_i32_26 = arith.constant 1 : i32
    %53 = vector.broadcast %c1_i32_26 : i32 to vector<4x256xi32>
    %54 = arith.cmpi sge, %12, %53 : vector<4x256xi32>
    %55 = arith.andi %52, %54 : vector<4x256xi1>
    %cst_27 = arith.constant 0.000000e+00 : f32
    %56 = vector.broadcast %cst_27 : f32 to vector<4x256xf32>
    %57 = arith.select %55, %50, %56 : vector<4x256xi1>, vector<4x256xf32>
    %c24 = arith.constant 24 : index
    %c0_28 = arith.constant 0 : index
    %58 = vector.load %arg7[%c24, %c0_28] : memref<36x256xf32, #tpu.memory_space<vmem>>, vector<4x256xf32>
    tpu.vector_store %arg7[%c24, %c0_28], %57 {strides = array<i32>} : memref<36x256xf32, #tpu.memory_space<vmem>>, vector<4x256xf32>,
    %c240_i32_29 = arith.constant 240 : i32
    %59 = tpu.dynamic_rotate %9 by %c240_i32_29 dim 1 : vector<4x256xf32>, i32 -> vector<4x256xf32>
    %c240_i32_30 = arith.constant 240 : i32
    %60 = vector.broadcast %c240_i32_30 : i32 to vector<4x256xi32>
    %61 = arith.cmpi slt, %10, %60 : vector<4x256xi32>
    %cst_31 = arith.constant 0.000000e+00 : f32
    %62 = vector.broadcast %cst_31 : f32 to vector<4x256xf32>
    %63 = arith.select %61, %59, %62 : vector<4x256xi1>, vector<4x256xf32>
    %c28 = arith.constant 28 : index
    %c0_32 = arith.constant 0 : index
    %64 = vector.load %arg7[%c28, %c0_32] : memref<36x256xf32, #tpu.memory_space<vmem>>, vector<4x256xf32>
    tpu.vector_store %arg7[%c28, %c0_32], %63 {strides = array<i32>} : memref<36x256xf32, #tpu.memory_space<vmem>>, vector<4x256xf32>,
    %c239_i32 = arith.constant 239 : i32
    %65 = tpu.dynamic_rotate %9 by %c239_i32 dim 1 : vector<4x256xf32>, i32 -> vector<4x256xf32>
    %c240_i32_33 = arith.constant 240 : i32
    %66 = vector.broadcast %c240_i32_33 : i32 to vector<4x256xi32>
    %67 = arith.cmpi slt, %10, %66 : vector<4x256xi32>
    %c15_i32_34 = arith.constant 15 : i32
    %68 = vector.broadcast %c15_i32_34 : i32 to vector<4x256xi32>
    %69 = arith.cmpi slt, %12, %68 : vector<4x256xi32>
    %70 = arith.andi %67, %69 : vector<4x256xi1>
    %cst_35 = arith.constant 0.000000e+00 : f32
    %71 = vector.broadcast %cst_35 : f32 to vector<4x256xf32>
    %72 = arith.select %70, %65, %71 : vector<4x256xi1>, vector<4x256xf32>
    %c32 = arith.constant 32 : index
    %c0_36 = arith.constant 0 : index
    %73 = vector.load %arg7[%c32, %c0_36] : memref<36x256xf32, #tpu.memory_space<vmem>>, vector<4x256xf32>
    tpu.vector_store %arg7[%c32, %c0_36], %72 {strides = array<i32>} : memref<36x256xf32, #tpu.memory_space<vmem>>, vector<4x256xf32>,
    %c0_37 = arith.constant 0 : index
    %c0_38 = arith.constant 0 : index
    %74 = vector.load %arg2[%c0_37, %c0_38] : memref<4x36xf32, #tpu.memory_space<vmem>>, vector<4x36xf32>
    %c0_39 = arith.constant 0 : index
    %c0_40 = arith.constant 0 : index
    %75 = vector.load %arg7[%c0_39, %c0_40] : memref<36x256xf32, #tpu.memory_space<vmem>>, vector<36x256xf32>
    %cst_41 = arith.constant dense<0.000000e+00> : vector<4x256xf32>
    %76 = tpu.matmul %74, %75, %cst_41 {dimension_numbers = #tpu.dot_dimension_numbers<[1], [0], [0], [1], [0, 0, 1, 1], [], []>} : vector<4x36xf32>, vector<36x256xf32>, vector<4x256xf32> -> vector<4x256xf32>
    %c0_42 = arith.constant 0 : index
    %c0_43 = arith.constant 0 : index
    %c0_44 = arith.constant 0 : index
    %77 = vector.load %arg5[%c0_42, %c0_43, %c0_44] : memref<1x4x256xf32, #tpu.memory_space<vmem>>, vector<1x4x256xf32>
    %78 = vector.shape_cast %77 : vector<1x4x256xf32> to vector<4x256xf32>
    %79 = vector.shape_cast %76 : vector<4x256xf32> to vector<1x4x256xf32>
    tpu.vector_store %arg5[%c0_42, %c0_43, %c0_44], %79 {strides = array<i32>} : memref<1x4x256xf32, #tpu.memory_space<vmem>>, vector<1x4x256xf32>,
    %cst_45 = arith.constant dense<0.000000e+00> : vector<4xf32>
    %80 = vector.multi_reduction <add>, %76, %cst_45 [1] : vector<4x256xf32> to vector<4xf32>
    %81 = vector.shape_cast %80 : vector<4xf32> to vector<4x1xf32>
    %cst_46 = arith.constant 3.906250e-03 : f32
    %82 = vector.broadcast %cst_46 : f32 to vector<4x1xf32>
    %83 = arith.mulf %81, %82 : vector<4x1xf32>
    %84 = vector.broadcast %83 : vector<4x1xf32> to vector<4x256xf32>
    %85 = arith.subf %76, %84 : vector<4x256xf32>
    %86 = arith.mulf %85, %85 : vector<4x256xf32>
    %cst_47 = arith.constant dense<0.000000e+00> : vector<4xf32>
    %87 = vector.multi_reduction <add>, %86, %cst_47 [1] : vector<4x256xf32> to vector<4xf32>
    %88 = vector.shape_cast %87 : vector<4xf32> to vector<4x1xf32>
    %89 = tpu.concatenate %81, %88 in 1 : vector<4x1xf32>, vector<4x1xf32> -> vector<4x2xf32>
    %c0_48 = arith.constant 0 : index
    %c0_49 = arith.constant 0 : index
    %c0_50 = arith.constant 0 : index
    %90 = vector.load %arg6[%c0_48, %c0_49, %c0_50] : memref<1x4x2xf32, #tpu.memory_space<vmem>>, vector<1x4x2xf32>
    %91 = vector.shape_cast %90 : vector<1x4x2xf32> to vector<4x2xf32>
    %92 = vector.shape_cast %89 : vector<4x2xf32> to vector<1x4x2xf32>
    tpu.vector_store %arg6[%c0_48, %c0_49, %c0_50], %92 {strides = array<i32>} : memref<1x4x2xf32, #tpu.memory_space<vmem>>, vector<1x4x2xf32>,
    return
  }
  func.func @transform_0(%arg0: i32) -> (i32, i32, i32) {
    %c0_i32 = arith.constant 0 : i32
    %c0_i32_0 = arith.constant 0 : i32
    %c0_i32_1 = arith.constant 0 : i32
    return %arg0, %c0_i32, %c0_i32_0 : i32, i32, i32
  }
  func.func @transform_1(%arg0: i32) -> (i32, i32) {
    %c0_i32 = arith.constant 0 : i32
    %c0_i32_0 = arith.constant 0 : i32
    %c0_i32_1 = arith.constant 0 : i32
    return %c0_i32, %c0_i32_0 : i32, i32
  }
  func.func @transform_2(%arg0: i32) -> (i32, i32) {
    %c0_i32 = arith.constant 0 : i32
    %c0_i32_0 = arith.constant 0 : i32
    %c0_i32_1 = arith.constant 0 : i32
    return %c0_i32, %c0_i32_0 : i32, i32
  }
  func.func @transform_3(%arg0: i32) -> (i32, i32) {
    %c0_i32 = arith.constant 0 : i32
    %c0_i32_0 = arith.constant 0 : i32
    %c0_i32_1 = arith.constant 0 : i32
    return %c0_i32, %c0_i32_0 : i32, i32
  }
  func.func @transform_4(%arg0: i32) -> (i32, i32, i32) {
    %c0_i32 = arith.constant 0 : i32
    %c0_i32_0 = arith.constant 0 : i32
    %c0_i32_1 = arith.constant 0 : i32
    return %arg0, %c0_i32, %c0_i32_0 : i32, i32, i32
  }
  func.func @transform_5(%arg0: i32) -> (i32, i32, i32) {
    %c0_i32 = arith.constant 0 : i32
    %c0_i32_0 = arith.constant 0 : i32
    %c0_i32_1 = arith.constant 0 : i32
    return %arg0, %c0_i32, %c0_i32_0 : i32, i32, i32
  }
}

module attributes {stable_mosaic.version = 11 : i64} {
  func.func @_upconv2x_kernel(%arg0: i32, %arg1: memref<1x4x256xf32, #tpu.memory_space<vmem>>, %arg2: memref<4x1xf32, #tpu.memory_space<vmem>>, %arg3: memref<4x1xf32, #tpu.memory_space<vmem>>, %arg4: memref<8x16xf32, #tpu.memory_space<vmem>>, %arg5: memref<8x1xf32, #tpu.memory_space<vmem>>, %arg6: memref<1x8x256xf32, #tpu.memory_space<vmem>>, %arg7: memref<16x256xf32, #tpu.memory_space<vmem>>) attributes {dimension_semantics = [#tpu.dimension_semantics<parallel>], iteration_bounds = array<i64: 2>, scalar_prefetch = 0 : i64, scratch_operands = 1 : i64, tpu.core_type = #tpu.core_type<tc>, window_params = [{transform_indices = @transform_0, window_bounds = array<i64: 1, 4, 256>}, {pipeline_mode = #tpu.pipeline_mode<synchronous>, transform_indices = @transform_1, window_bounds = array<i64: 4, 1>}, {pipeline_mode = #tpu.pipeline_mode<synchronous>, transform_indices = @transform_2, window_bounds = array<i64: 4, 1>}, {pipeline_mode = #tpu.pipeline_mode<synchronous>, transform_indices = @transform_3, window_bounds = array<i64: 8, 16>}, {pipeline_mode = #tpu.pipeline_mode<synchronous>, transform_indices = @transform_4, window_bounds = array<i64: 8, 1>}, {transform_indices = @transform_5, window_bounds = array<i64: 1, 8, 256>}]} {
    %c0 = arith.constant 0 : index
    %c0_0 = arith.constant 0 : index
    %c0_1 = arith.constant 0 : index
    %0 = vector.load %arg1[%c0, %c0_0, %c0_1] : memref<1x4x256xf32, #tpu.memory_space<vmem>>, vector<1x4x256xf32>
    %1 = vector.shape_cast %0 : vector<1x4x256xf32> to vector<4x256xf32>
    %c0_2 = arith.constant 0 : index
    %c0_3 = arith.constant 0 : index
    %2 = vector.load %arg2[%c0_2, %c0_3] : memref<4x1xf32, #tpu.memory_space<vmem>>, vector<4x1xf32>
    %3 = vector.broadcast %2 : vector<4x1xf32> to vector<4x256xf32>
    %4 = arith.mulf %1, %3 : vector<4x256xf32>
    %c0_4 = arith.constant 0 : index
    %c0_5 = arith.constant 0 : index
    %5 = vector.load %arg3[%c0_4, %c0_5] : memref<4x1xf32, #tpu.memory_space<vmem>>, vector<4x1xf32>
    %6 = vector.broadcast %5 : vector<4x1xf32> to vector<4x256xf32>
    %7 = arith.addf %4, %6 : vector<4x256xf32>
    %cst = arith.constant 0.000000e+00 : f32
    %8 = vector.broadcast %cst : f32 to vector<4x256xf32>
    %9 = arith.maximumf %7, %8 : vector<4x256xf32>
    %10 = tpu.iota {dimensions = array<i32: 1>} : vector<4x256xi32>
    %c15_i32 = arith.constant 15 : i32
    %11 = vector.broadcast %c15_i32 : i32 to vector<4x256xi32>
    %12 = arith.andi %10, %11 : vector<4x256xi32>
    %c0_6 = arith.constant 0 : index
    %c0_7 = arith.constant 0 : index
    %13 = vector.load %arg7[%c0_6, %c0_7] : memref<16x256xf32, #tpu.memory_space<vmem>>, vector<4x256xf32>
    tpu.vector_store %arg7[%c0_6, %c0_7], %9 {strides = array<i32>} : memref<16x256xf32, #tpu.memory_space<vmem>>, vector<4x256xf32>,
    %c255_i32 = arith.constant 255 : i32
    %14 = tpu.dynamic_rotate %9 by %c255_i32 dim 1 : vector<4x256xf32>, i32 -> vector<4x256xf32>
    %c15_i32_8 = arith.constant 15 : i32
    %15 = vector.broadcast %c15_i32_8 : i32 to vector<4x256xi32>
    %16 = arith.cmpi slt, %12, %15 : vector<4x256xi32>
    %cst_9 = arith.constant 0.000000e+00 : f32
    %17 = vector.broadcast %cst_9 : f32 to vector<4x256xf32>
    %18 = arith.select %16, %14, %17 : vector<4x256xi1>, vector<4x256xf32>
    %c4 = arith.constant 4 : index
    %c0_10 = arith.constant 0 : index
    %19 = vector.load %arg7[%c4, %c0_10] : memref<16x256xf32, #tpu.memory_space<vmem>>, vector<4x256xf32>
    tpu.vector_store %arg7[%c4, %c0_10], %18 {strides = array<i32>} : memref<16x256xf32, #tpu.memory_space<vmem>>, vector<4x256xf32>,
    %c240_i32 = arith.constant 240 : i32
    %20 = tpu.dynamic_rotate %9 by %c240_i32 dim 1 : vector<4x256xf32>, i32 -> vector<4x256xf32>
    %c240_i32_11 = arith.constant 240 : i32
    %21 = vector.broadcast %c240_i32_11 : i32 to vector<4x256xi32>
    %22 = arith.cmpi slt, %10, %21 : vector<4x256xi32>
    %cst_12 = arith.constant 0.000000e+00 : f32
    %23 = vector.broadcast %cst_12 : f32 to vector<4x256xf32>
    %24 = arith.select %22, %20, %23 : vector<4x256xi1>, vector<4x256xf32>
    %c8 = arith.constant 8 : index
    %c0_13 = arith.constant 0 : index
    %25 = vector.load %arg7[%c8, %c0_13] : memref<16x256xf32, #tpu.memory_space<vmem>>, vector<4x256xf32>
    tpu.vector_store %arg7[%c8, %c0_13], %24 {strides = array<i32>} : memref<16x256xf32, #tpu.memory_space<vmem>>, vector<4x256xf32>,
    %c239_i32 = arith.constant 239 : i32
    %26 = tpu.dynamic_rotate %9 by %c239_i32 dim 1 : vector<4x256xf32>, i32 -> vector<4x256xf32>
    %c240_i32_14 = arith.constant 240 : i32
    %27 = vector.broadcast %c240_i32_14 : i32 to vector<4x256xi32>
    %28 = arith.cmpi slt, %10, %27 : vector<4x256xi32>
    %c15_i32_15 = arith.constant 15 : i32
    %29 = vector.broadcast %c15_i32_15 : i32 to vector<4x256xi32>
    %30 = arith.cmpi slt, %12, %29 : vector<4x256xi32>
    %31 = arith.andi %28, %30 : vector<4x256xi1>
    %cst_16 = arith.constant 0.000000e+00 : f32
    %32 = vector.broadcast %cst_16 : f32 to vector<4x256xf32>
    %33 = arith.select %31, %26, %32 : vector<4x256xi1>, vector<4x256xf32>
    %c12 = arith.constant 12 : index
    %c0_17 = arith.constant 0 : index
    %34 = vector.load %arg7[%c12, %c0_17] : memref<16x256xf32, #tpu.memory_space<vmem>>, vector<4x256xf32>
    tpu.vector_store %arg7[%c12, %c0_17], %33 {strides = array<i32>} : memref<16x256xf32, #tpu.memory_space<vmem>>, vector<4x256xf32>,
    %c0_18 = arith.constant 0 : index
    %c0_19 = arith.constant 0 : index
    %35 = vector.load %arg4[%c0_18, %c0_19] : memref<8x16xf32, #tpu.memory_space<vmem>>, vector<8x16xf32>
    %c0_20 = arith.constant 0 : index
    %c0_21 = arith.constant 0 : index
    %36 = vector.load %arg7[%c0_20, %c0_21] : memref<16x256xf32, #tpu.memory_space<vmem>>, vector<16x256xf32>
    %cst_22 = arith.constant dense<0.000000e+00> : vector<8x256xf32>
    %37 = tpu.matmul %35, %36, %cst_22 {dimension_numbers = #tpu.dot_dimension_numbers<[1], [0], [0], [1], [0, 0, 1, 1], [], []>} : vector<8x16xf32>, vector<16x256xf32>, vector<8x256xf32> -> vector<8x256xf32>
    %c0_23 = arith.constant 0 : index
    %c0_24 = arith.constant 0 : index
    %38 = vector.load %arg5[%c0_23, %c0_24] : memref<8x1xf32, #tpu.memory_space<vmem>>, vector<8x1xf32>
    %39 = vector.broadcast %38 : vector<8x1xf32> to vector<8x256xf32>
    %40 = arith.addf %37, %39 : vector<8x256xf32>
    %cst_25 = arith.constant 0.000000e+00 : f32
    %41 = vector.broadcast %cst_25 : f32 to vector<8x256xf32>
    %42 = arith.maximumf %40, %41 : vector<8x256xf32>
    %c0_26 = arith.constant 0 : index
    %c0_27 = arith.constant 0 : index
    %c0_28 = arith.constant 0 : index
    %43 = vector.load %arg6[%c0_26, %c0_27, %c0_28] : memref<1x8x256xf32, #tpu.memory_space<vmem>>, vector<1x8x256xf32>
    %44 = vector.shape_cast %43 : vector<1x8x256xf32> to vector<8x256xf32>
    %45 = vector.shape_cast %42 : vector<8x256xf32> to vector<1x8x256xf32>
    tpu.vector_store %arg6[%c0_26, %c0_27, %c0_28], %45 {strides = array<i32>} : memref<1x8x256xf32, #tpu.memory_space<vmem>>, vector<1x8x256xf32>,
    return
  }
  func.func @transform_0(%arg0: i32) -> (i32, i32, i32) {
    %c0_i32 = arith.constant 0 : i32
    %c0_i32_0 = arith.constant 0 : i32
    %c0_i32_1 = arith.constant 0 : i32
    return %arg0, %c0_i32, %c0_i32_0 : i32, i32, i32
  }
  func.func @transform_1(%arg0: i32) -> (i32, i32) {
    %c0_i32 = arith.constant 0 : i32
    %c0_i32_0 = arith.constant 0 : i32
    %c0_i32_1 = arith.constant 0 : i32
    return %c0_i32, %c0_i32_0 : i32, i32
  }
  func.func @transform_2(%arg0: i32) -> (i32, i32) {
    %c0_i32 = arith.constant 0 : i32
    %c0_i32_0 = arith.constant 0 : i32
    %c0_i32_1 = arith.constant 0 : i32
    return %c0_i32, %c0_i32_0 : i32, i32
  }
  func.func @transform_3(%arg0: i32) -> (i32, i32) {
    %c0_i32 = arith.constant 0 : i32
    %c0_i32_0 = arith.constant 0 : i32
    %c0_i32_1 = arith.constant 0 : i32
    return %c0_i32, %c0_i32_0 : i32, i32
  }
  func.func @transform_4(%arg0: i32) -> (i32, i32) {
    %c0_i32 = arith.constant 0 : i32
    %c0_i32_0 = arith.constant 0 : i32
    %c0_i32_1 = arith.constant 0 : i32
    return %c0_i32, %c0_i32_0 : i32, i32
  }
  func.func @transform_5(%arg0: i32) -> (i32, i32, i32) {
    %c0_i32 = arith.constant 0 : i32
    %c0_i32_0 = arith.constant 0 : i32
    %c0_i32_1 = arith.constant 0 : i32
    return %arg0, %c0_i32, %c0_i32_0 : i32, i32, i32
  }
}

</mosaic_0001>

<llo_original>
// kernel: tile.8
$region0: #{tile.8}
  #allocation2 [shape = 's32[1]{0}', space=sflag, size = 0x4, scoped, tag = 'scoped memory for tile.8']
  %s0 = inlined_call_operand.hbm [shape: f32[2], index: 0, kind: input, shape index: {}]
  %s1 = inlined_call_operand.vmem [shape: f32[4,2], index: 1, kind: output, shape index: {}]
  $region1: #{tile.8} parent=0
    #allocation0 [shape = 'u8[512]{0}', space=vmem, size = 0x400, scoped, tag = 'operand span for operand 0']
    #allocation1 [shape = 's32[1]{0}', space=sflag, size = 0x4, scoped, tag = 'scoped memory for tile.8']
    %2 = vsyncpa [#allocation1], 0
    // Predicated region
    $region2: #{tile.8} parent=1 // pred_check
      _
    $region3: #{tile.8} parent=1 // pred_check_branch
      %4 = sbr.rel (0) target = $region5
    $region4: #{tile.8} parent=1 // pred_region
      %s6 = ssub.s32 16, 16
      %7 = vsyncadd [#allocation1], %s6
      %s9 = sshll.u32 [#allocation0], 4
      %s10 = int_to_ptr.vmem [resolvable:$true] %s9
      %12 = dma.hbm_to_vmem [thread:$0]  %s0, 16, %s10, [#allocation1]
    $region5: #{tile.8} parent=1 // pred_fallthru
      _
    // Predicated region
    $region6: #{tile.8} parent=1 // pred_check
      _
    $region7: #{tile.8} parent=1 // pred_check_branch
      %14 = sbr.rel (0) target = $region9
    $region8: #{tile.8} parent=1 // pred_region
      %15 = dma.done [#allocation1], 16
    $region9: #{tile.8} parent=1 // pred_fallthru
      _
    %v16 = vld [vmem:[#allocation0] ss:$0 sm:$0xff]
    %17 = vst [vmem:[%s1] sm:$0xf] %v16
    %18 = vsyncpa [#allocation1], 1

// kernel: tile.0
$region0: #{tile.0}
  %s0 = inlined_call_operand.vmem [shape: f32[4,2], index: 0, kind: input, shape index: {}]
  %s1 = inlined_call_operand.vmem [shape: f32[8,1], index: 1, kind: output, shape index: {}]
  $region1: #{tile.0} parent=0
    #allocation0 [shape = 'u8[4096]{0}', space=vmem, size = 0x1000, scoped, tag = 'scoped mem for input reshape']
    %s3 = sshllo.u32 0, 4
    %v4 = vld [vmem:[%s0] sm:%s3]
    %5 = vst [vmem:[#allocation0] sm:%s3] %v4
    %v6 = vld [vmem:[#allocation0] sm:$0xf]
    %vm7 = vcmask 7168
    %8 = vst.msk [vmem:[%s1] ss:$2 sm:$0xf] %vm7, %v6
    %v9 = vld [vmem:[#allocation0] sm:$0xf]
    %10 = vrot.lane.b32.xlu0 %v9, 127
    %v11 = vpop.permute.xlu0 %10
    %vm12 = vcmask 7168
    %s13 = scalar_lea.vmem %s1, 1
    %14 = vst.msk [vmem:[%s13] ss:$2 sm:$0xf] %vm12, %v11

// kernel: upsample_forward.4
$region0: #{upsample_forward.4}
  #allocation0 [shape = 'u32[]', space=smem, size = 0x4, offset = 0x4, fixed_abs, tag = 'smem constant byte address 0x4 - core index']
  #allocation1 [shape = 'u32[144,128]{1,0:T(1,128)}', space=vmem, size = 0x12000, scoped, tag = 'internal scratch']
  #allocation2 [shape = 'f32[36,256]{1,0:T(8,128)}', space=vmem, size = 0xa000, scoped, tag = 'scratch operand']
  %s0 = inlined_call_operand.vmem [shape: f32[2,4,256], index: 0, kind: input, shape index: {}]
  %s1 = inlined_call_operand.vmem [shape: f32[4,36], index: 1, kind: input, shape index: {}]
  %s2 = inlined_call_operand.vmem [shape: f32[4,1], index: 2, kind: input, shape index: {}]
  %s3 = inlined_call_operand.vmem [shape: f32[4,1], index: 3, kind: input, shape index: {}]
  %s4 = inlined_call_operand.vmem [shape: f32[2,4,256], index: 4, kind: output, shape index: {0}]
  %s5 = inlined_call_operand.vmem [shape: f32[2,4,2], index: 5, kind: output, shape index: {1}]
  %6 = xla_tuple %s4, %s5
  %s7 = sld [smem:[#allocation0]]
  $region57: #{upsample_forward.4} parent=0
    _
  %s9 = ssub.s32 1, %s7
  %s10 = scalar_select 0, %s9, %s7
  loop: start=0, step=1, limit=4
  $region2: #{upsample_forward.4} parent=0 // loop_pre_header
    _
  $region3: #{upsample_forward.4} parent=0 // loop_header
    %s12 = sphi 0, %s16
    %p13 = scmp.ge.s32.totalorder %s12, 4
    %s22 = sphi 0, %s24
    %s25 = sphi 0, %s22
    %s26 = sphi 0, %s25
    %s42 = sphi 0, %s26
    %s46 = sphi 0, %s46
    %s48 = sphi 0, %s46
    %s49 = sphi 0, %s48
    %s63 = sphi 0, %s49
    %s67 = sphi 0, %s67
    %s69 = sphi 0, %s67
    %s70 = sphi 0, %s69
    %s84 = sphi 0, %s70
    %s88 = sphi 0, %s88
    %s90 = sphi 0, %s88
    %s91 = sphi 0, %s90
    %s105 = sphi 0, %s91
    %s111 = sphi 0, %s113
    %s114 = sphi 0, %s111
    %s115 = sphi 0, %s114
    %s131 = sphi 0, %s115
    %s137 = sphi 0, %s139
    %s140 = sphi 0, %s137
    %s141 = sphi 0, %s140
    %s157 = sphi 0, %s141
  $region4: #{upsample_forward.4} parent=0 // loop_header_branch
    %15 = sbr.rel (%p13) target = $region8
  $region5: #{upsample_forward.4} parent=0 // loop_body
    %s17 = ssub.s32 %s12, 1
    %s18 = ssub.s32 %s12, 2
    %s19 = sadd.s32 %s12, 1
    %s20 = ssub.s32 %s12, %s19
    %p21 = scmp.eq.s32.totalorder %s20, 0
    %s23 = sadd.s32 %s22, 1
    %s24 = scalar_select %p21, %s22, %s23
    %p27 = pneg %p21
    %p28 = scmp.eq.s32.totalorder %s12, 1
    %p29 = por %p27, %p28
    %p30 = scmp.ne.s32.totalorder %s22, %s25
    %p31 = scmp.eq.s32.totalorder %s12, 0
    %p32 = por %p30, %p31
    %p33 = scmp.ne.s32.totalorder %s22, %s25
    %p34 = scmp.eq.s32.totalorder %s17, 1
    %p35 = por %p33, %p34
    %p36 = scmp.ne.s32.totalorder %s25, %s26
    %p37 = scmp.eq.s32.totalorder %s17, 0
    %p38 = por %p36, %p37
    %p39 = scmp.ne.s32.totalorder %s25, %s26
    %p40 = scmp.eq.s32.totalorder %s18, 1
    %p41 = por %p39, %p40
    %p43 = scmp.ne.s32.totalorder %s26, %s42
    %p44 = scmp.eq.s32.totalorder %s18, 0
    %p45 = por %p43, %p44
    %s47 = sadd.s32 %s46, 1
    %p50 = scmp.eq.s32.totalorder %s12, 1
    %p51 = scmp.ne.s32.totalorder %s46, %s48
    %p52 = scmp.eq.s32.totalorder %s12, 0
    %p53 = por %p51, %p52
    %p54 = scmp.ne.s32.totalorder %s46, %s48
    %p55 = scmp.eq.s32.totalorder %s17, 1
    %p56 = por %p54, %p55
    %p57 = scmp.ne.s32.totalorder %s48, %s49
    %p58 = scmp.eq.s32.totalorder %s17, 0
    %p59 = por %p57, %p58
    %p60 = scmp.ne.s32.totalorder %s48, %s49
    %p61 = scmp.eq.s32.totalorder %s18, 1
    %p62 = por %p60, %p61
    %p64 = scmp.ne.s32.totalorder %s49, %s63
    %p65 = scmp.eq.s32.totalorder %s18, 0
    %p66 = por %p64, %p65
    %s68 = sadd.s32 %s67, 1
    %p71 = scmp.eq.s32.totalorder %s12, 1
    %p72 = scmp.ne.s32.totalorder %s67, %s69
    %p73 = scmp.eq.s32.totalorder %s12, 0
    %p74 = por %p72, %p73
    %p75 = scmp.ne.s32.totalorder %s67, %s69
    %p76 = scmp.eq.s32.totalorder %s17, 1
    %p77 = por %p75, %p76
    %p78 = scmp.ne.s32.totalorder %s69, %s70
    %p79 = scmp.eq.s32.totalorder %s17, 0
    %p80 = por %p78, %p79
    %p81 = scmp.ne.s32.totalorder %s69, %s70
    %p82 = scmp.eq.s32.totalorder %s18, 1
    %p83 = por %p81, %p82
    %p85 = scmp.ne.s32.totalorder %s70, %s84
    %p86 = scmp.eq.s32.totalorder %s18, 0
    %p87 = por %p85, %p86
    %s89 = sadd.s32 %s88, 1
    %p92 = scmp.eq.s32.totalorder %s12, 1
    %p93 = scmp.ne.s32.totalorder %s88, %s90
    %p94 = scmp.eq.s32.totalorder %s12, 0
    %p95 = por %p93, %p94
    %p96 = scmp.ne.s32.totalorder %s88, %s90
    %p97 = scmp.eq.s32.totalorder %s17, 1
    %p98 = por %p96, %p97
    %p99 = scmp.ne.s32.totalorder %s90, %s91
    %p100 = scmp.eq.s32.totalorder %s17, 0
    %p101 = por %p99, %p100
    %p102 = scmp.ne.s32.totalorder %s90, %s91
    %p103 = scmp.eq.s32.totalorder %s18, 1
    %p104 = por %p102, %p103
    %p106 = scmp.ne.s32.totalorder %s91, %s105
    %p107 = scmp.eq.s32.totalorder %s18, 0
    %p108 = por %p106, %p107
    %s109 = ssub.s32 %s12, %s19
    %p110 = scmp.eq.s32.totalorder %s109, 0
    %s112 = sadd.s32 %s111, 1
    %s113 = scalar_select %p110, %s111, %s112
    %p116 = pneg %p110
    %p117 = scmp.eq.s32.totalorder %s12, 1
    %p118 = por %p116, %p117
    %p119 = scmp.ne.s32.totalorder %s111, %s114
    %p120 = scmp.eq.s32.totalorder %s12, 0
    %p121 = por %p119, %p120
    %p122 = scmp.ne.s32.totalorder %s111, %s114
    %p123 = scmp.eq.s32.totalorder %s17, 1
    %p124 = por %p122, %p123
    %p125 = scmp.ne.s32.totalorder %s114, %s115
    %p126 = scmp.eq.s32.totalorder %s17, 0
    %p127 = por %p125, %p126
    %p128 = scmp.ne.s32.totalorder %s114, %s115
    %p129 = scmp.eq.s32.totalorder %s18, 1
    %p130 = por %p128, %p129
    %p132 = scmp.ne.s32.totalorder %s115, %s131
    %p133 = scmp.eq.s32.totalorder %s18, 0
    %p134 = por %p132, %p133
    %s135 = ssub.s32 %s12, %s19
    %p136 = scmp.eq.s32.totalorder %s135, 0
    %s138 = sadd.s32 %s137, 1
    %s139 = scalar_select %p136, %s137, %s138
    %p142 = pneg %p136
    %p143 = scmp.eq.s32.totalorder %s12, 1
    %p144 = por %p142, %p143
    %p145 = scmp.ne.s32.totalorder %s137, %s140
    %p146 = scmp.eq.s32.totalorder %s12, 0
    %p147 = por %p145, %p146
    %p148 = scmp.ne.s32.totalorder %s137, %s140
    %p149 = scmp.eq.s32.totalorder %s17, 1
    %p150 = por %p148, %p149
    %p151 = scmp.ne.s32.totalorder %s140, %s141
    %p152 = scmp.eq.s32.totalorder %s17, 0
    %p153 = por %p151, %p152
    %p154 = scmp.ne.s32.totalorder %s140, %s141
    %p155 = scmp.eq.s32.totalorder %s18, 1
    %p156 = por %p154, %p155
    %p158 = scmp.ne.s32.totalorder %s141, %s157
    %p159 = scmp.eq.s32.totalorder %s18, 0
    %p160 = por %p158, %p159
    %p161 = scmp.le.s32.totalorder 1, %s12
    %p162 = scmp.lt.s32.totalorder %s12, 3
    %p163 = pnand %p161, %p162
    %p164 = pneg %p163
    // Predicated region
    $region9: #{upsample_forward.4} parent=5 // pred_check
      _
    $region10: #{upsample_forward.4} parent=5 // pred_check_branch
      %166 = sbr.rel (%p163) target = $region12
    $region11: #{upsample_forward.4} parent=5 // pred_region
      %s167 = ssub.s32 %s12, 1
      // Predicated region
      $region13: #{upsample_forward.4} parent=11 // pred_check
        %p168 = pneg %p59
      $region14: #{upsample_forward.4} parent=11 // pred_check_branch
        %170 = sbr.rel (%p168) target = $region16
      $region15: #{upsample_forward.4} parent=11 // pred_region
        _
      $region16: #{upsample_forward.4} parent=11 // pred_fallthru
        _
      // Predicated region
      $region17: #{upsample_forward.4} parent=11 // pred_check
        %p171 = pneg %p80
      $region18: #{upsample_forward.4} parent=11 // pred_check_branch
        %173 = sbr.rel (%p171) target = $region20
      $region19: #{upsample_forward.4} parent=11 // pred_region
        _
      $region20: #{upsample_forward.4} parent=11 // pred_fallthru
        _
      // Predicated region
      $region21: #{upsample_forward.4} parent=11 // pred_check
        %p174 = pneg %p101
      $region22: #{upsample_forward.4} parent=11 // pred_check_branch
        %176 = sbr.rel (%p174) target = $region24
      $region23: #{upsample_forward.4} parent=11 // pred_region
        _
      $region24: #{upsample_forward.4} parent=11 // pred_fallthru
        _
    $region12: #{upsample_forward.4} parent=5 // pred_fallthru
      _
    %p177 = scmp.lt.s32.totalorder %s12, 2
    // Predicated region
    $region25: #{upsample_forward.4} parent=5 // pred_check
      %p178 = pneg %p177
    $region26: #{upsample_forward.4} parent=5 // pred_check_branch
      %180 = sbr.rel (%p178) target = $region28
    $region27: #{upsample_forward.4} parent=5 // pred_region
      // Predicated region
      $region29: #{upsample_forward.4} parent=27 // pred_check
        %p181 = pneg %p32
      $region30: #{upsample_forward.4} parent=27 // pred_check_branch
        %183 = sbr.rel (%p181) target = $region32
      $region31: #{upsample_forward.4} parent=27 // pred_region
        %p184 = scmp.lt.s32.totalorder %s12, 1
        %s185 = scalar_select %p184, %s12, 1
        %s186 = smul.addr %s185, 2
        %s187 = smul.addr %s186, 4
        %s188 = scalar_lea.vmem %s0, %s187
      $region32: #{upsample_forward.4} parent=27 // pred_fallthru
        _
    $region28: #{upsample_forward.4} parent=5 // pred_fallthru
      _
    %p189 = scmp.le.s32.totalorder 1, %s12
    %p190 = scmp.lt.s32.totalorder %s12, 3
    %p191 = pnand %p189, %p190
    %p192 = pneg %p191
    // Predicated region
    $region33: #{upsample_forward.4} parent=5 // pred_check
      _
    $region34: #{upsample_forward.4} parent=5 // pred_check_branch
      %194 = sbr.rel (%p191) target = $region36
    $region35: #{upsample_forward.4} parent=5 // pred_region
      %s195 = ssub.s32 %s12, 1
      %p196 = scmp.lt.s32.totalorder %s17, 1
      %s197 = scalar_select %p196, %s17, 1
      %s198 = smul.addr %s197, 2
      %s199 = smul.addr %s198, 4
      %s200 = scalar_lea.vmem %s0, %s199
      %p201 = pneg %p38
      %p202 = pneg %p35
      %p203 = pneg %p59
      %p204 = pneg %p56
      %p205 = pneg %p80
      %p206 = pneg %p77
      %p207 = pneg %p101
      %p208 = pneg %p98
      %p209 = pneg %p127
      %p210 = pneg %p124
      %p211 = scmp.lt.s32.totalorder %s17, 1
      %s212 = scalar_select %p211, %s17, 1
      %s213 = smul.addr %s212, 2
      %s214 = smul.addr %s213, 4
      %s215 = scalar_lea.vmem %s4, %s214
      %p216 = pneg %p153
      %p217 = pneg %p150
      %p218 = scmp.lt.s32.totalorder %s17, 1
      %s219 = scalar_select %p218, %s17, 1
      %s220 = smul.addr %s219, 4
      %s221 = scalar_lea.vmem %s5, %s220
      %p222 = scmp.lt.s32.totalorder %s17, 1
      %s223 = scalar_select %p222, %s17, 1
      %s224 = smul.addr %s223, 2
      %s225 = smul.addr %s224, 4
      %s226 = scalar_lea.vmem %s0, %s225
      %p227 = scmp.lt.s32.totalorder %s17, 1
      %s228 = scalar_select %p227, %s17, 1
      %s229 = smul.addr %s228, 2
      %s230 = smul.addr %s229, 4
      %s231 = scalar_lea.vmem %s4, %s230
      %p232 = scmp.lt.s32.totalorder %s17, 1
      %s233 = scalar_select %p232, %s17, 1
      %s234 = smul.addr %s233, 4
      %s235 = scalar_lea.vmem %s5, %s234
      %v236 = vld [vmem:[%s226] sm:$0xff]
      %v237 = vld [vmem:[%s2] sm:$0xf]
      %239 = vset.pattern.permute.xlu0 0
      %240 = vperm.xlu0 %239, %v237
      %v241 = vpop.permute.xlu0 %240
      %v243 = vunpack.c.l.s4 839922192
      %v244 = vunpack.c.0.s8 %v243
      %v245 = vlaneseq
      %v246 = vshrl.u32 %v245, 7
      %v247 = vsub.s32 %v244, %v246
      %v248 = vrot.slane %v241, %v247
      %v250 = vmul.f32 %v236, %v248
      %v251 = vld [vmem:[%s3] sm:$0xf]
      %253 = vset.pattern.permute.xlu0 0
      %254 = vperm.xlu0 %253, %v251
      %v255 = vpop.permute.xlu0 %254
      %v257 = vunpack.c.l.s4 839922192
      %v258 = vunpack.c.0.s8 %v257
      %v259 = vlaneseq
      %v260 = vshrl.u32 %v259, 7
      %v261 = vsub.s32 %v258, %v260
      %v262 = vrot.slane %v255, %v261
      %v264 = vadd.f32 %v250, %v262
      %v265 = vmax.f32 %v264, 0.0
      %v266 = vlaneseq
      %v267 = vand.u32 %v266, 127
      %v268 = vadd.s32 %v267, 128
      %v269 = vand.u32 %v267, 15
      %v270 = vand.u32 %v268, 15
      %v272 = vcombine.high %v265, %v265
      %274 = vrot.lane.b32.xlu0 %v265, 17
      %v275 = vpop.permute.xlu0 %274
      %276 = vrot.lane.b32.xlu0 %v272, 17
      %v277 = vpop.permute.xlu0 %276
      %vm278 = vcmp.lt.s32.totalorder %v267, 17
      %v279 = vsel %vm278, %v275, %v277
      %v280 = vsel %vm278, %v277, %v275
      %vm281 = vcmp.ge.s32.totalorder %v267, 16
      %vm282 = vcmp.ge.s32.totalorder %v268, 16
      %vm283 = vcmp.ge.s32.totalorder %v269, 1
      %vm284 = vcmp.ge.s32.totalorder %v270, 1
      %vm285 = vmand %vm281, %vm283
      %vm286 = vmand %vm282, %vm284
      %v287 = vsel %vm285, %v280, 0.0
      %v288 = vsel %vm286, %v279, 0.0
      %289 = vst [vmem:[#allocation2] sm:$0xf] %v287
      %290 = vst [vmem:[#allocation2 + $0x8] sm:$0xf] %v288
      %291 = vrot.lane.b32.xlu0 %v265, 16
      %v292 = vpop.permute.xlu0 %291
      %293 = vrot.lane.b32.xlu0 %v272, 16
      %v294 = vpop.permute.xlu0 %293
      %vm295 = vcmp.lt.s32.totalorder %v267, 16
      %v296 = vsel %vm295, %v292, %v294
      %v297 = vsel %vm295, %v294, %v292
      %v298 = vsel %vm281, %v297, 0.0
      %v299 = vsel %vm282, %v296, 0.0
      %v302 = vrot.slane %v298, 4
      %v303 = vrot.slane %v299, 4
      %306 = vst [vmem:[#allocation2] sm:$0xf0] %v302
      %307 = vst [vmem:[#allocation2 + $0x8] sm:$0xf0] %v303
      %308 = vrot.lane.b32.xlu0 %v265, 15
      %v309 = vpop.permute.xlu0 %308
      %310 = vrot.lane.b32.xlu0 %v272, 15
      %v311 = vpop.permute.xlu0 %310
      %vm312 = vcmp.lt.s32.totalorder %v267, 15
      %v313 = vsel %vm312, %v309, %v311
      %v314 = vsel %vm312, %v311, %v309
      %vm315 = vcmp.lt.s32.totalorder %v269, 15
      %vm316 = vcmp.lt.s32.totalorder %v270, 15
      %vm317 = vmand %vm281, %vm315
      %vm318 = vmand %vm282, %vm316
      %v319 = vsel %vm317, %v314, 0.0
      %v320 = vsel %vm318, %v313, 0.0
      %321 = vst [vmem:[#allocation2 + $0x10] sm:$0xf] %v319
      %322 = vst [vmem:[#allocation2 + $0x18] sm:$0xf] %v320
      %323 = vrot.lane.b32.xlu0 %v265, 1
      %v324 = vpop.permute.xlu0 %323
      %325 = vrot.lane.b32.xlu0 %v272, 1
      %v326 = vpop.permute.xlu0 %325
      %vm327 = vcmp.lt.s32.totalorder %v267, 1
      %v328 = vsel %vm327, %v324, %v326
      %v329 = vsel %vm327, %v326, %v324
      %v330 = vsel %vm283, %v329, 0.0
      %v331 = vsel %vm284, %v328, 0.0
      %v334 = vrot.slane %v330, 4
      %v335 = vrot.slane %v331, 4
      %338 = vst [vmem:[#allocation2 + $0x10] sm:$0xf0] %v334
      %339 = vst [vmem:[#allocation2 + $0x18] sm:$0xf0] %v335
      %340 = vst [vmem:[#allocation2 + $0x20] sm:$0xf] %v265
      %341 = vst [vmem:[#allocation2 + $0x28] sm:$0xf] %v272
      %342 = vrot.lane.b32.xlu0 %v265, 127
      %v343 = vpop.permute.xlu0 %342
      %344 = vrot.lane.b32.xlu0 %v272, 127
      %v345 = vpop.permute.xlu0 %344
      %vm346 = vcmp.lt.s32.totalorder %v267, 127
      %v347 = vsel %vm346, %v343, %v345
      %v348 = vsel %vm346, %v345, %v343
      %v349 = vsel %vm315, %v347, 0.0
      %v350 = vsel %vm316, %v348, 0.0
      %v353 = vrot.slane %v349, 4
      %v354 = vrot.slane %v350, 4
      %357 = vst [vmem:[#allocation2 + $0x20] sm:$0xf0] %v353
      %358 = vst [vmem:[#allocation2 + $0x28] sm:$0xf0] %v354
      %359 = vrot.lane.b32.xlu0 %v265, 113
      %v360 = vpop.permute.xlu0 %359
      %361 = vrot.lane.b32.xlu0 %v272, 113
      %v362 = vpop.permute.xlu0 %361
      %vm363 = vcmp.lt.s32.totalorder %v267, 113
      %v364 = vsel %vm363, %v360, %v362
      %v365 = vsel %vm363, %v362, %v360
      %vm366 = vcmp.lt.s32.totalorder %v267, 240
      %vm367 = vcmp.lt.s32.totalorder %v268, 240
      %vm368 = vmand %vm366, %vm283
      %vm369 = vmand %vm367, %vm284
      %v370 = vsel %vm368, %v364, 0.0
      %v371 = vsel %vm369, %v365, 0.0
      %372 = vst [vmem:[#allocation2 + $0x30] sm:$0xf] %v370
      %373 = vst [vmem:[#allocation2 + $0x38] sm:$0xf] %v371
      %374 = vrot.lane.b32.xlu0 %v265, 112
      %v375 = vpop.permute.xlu0 %374
      %376 = vrot.lane.b32.xlu0 %v272, 112
      %v377 = vpop.permute.xlu0 %376
      %vm378 = vcmp.lt.s32.totalorder %v267, 112
      %v379 = vsel %vm378, %v375, %v377
      %v380 = vsel %vm378, %v377, %v375
      %v381 = vsel %vm366, %v379, 0.0
      %v382 = vsel %vm367, %v380, 0.0
      %v385 = vrot.slane %v381, 4
      %v386 = vrot.slane %v382, 4
      %389 = vst [vmem:[#allocation2 + $0x30] sm:$0xf0] %v385
      %390 = vst [vmem:[#allocation2 + $0x38] sm:$0xf0] %v386
      %391 = vrot.lane.b32.xlu0 %v265, 111
      %v392 = vpop.permute.xlu0 %391
      %393 = vrot.lane.b32.xlu0 %v272, 111
      %v394 = vpop.permute.xlu0 %393
      %vm395 = vcmp.lt.s32.totalorder %v267, 111
      %v396 = vsel %vm395, %v392, %v394
      %v397 = vsel %vm395, %v394, %v392
      %vm398 = vmand %vm366, %vm315
      %vm399 = vmand %vm367, %vm316
      %v400 = vsel %vm398, %v396, 0.0
      %v401 = vsel %vm399, %v397, 0.0
      %402 = vst [vmem:[#allocation2 + $0x40] sm:$0xf] %v400
      %403 = vst [vmem:[#allocation2 + $0x48] sm:$0xf] %v401
      %v404 = vld [vmem:[%s1] sm:$0xf]
      %v405 = vld [vmem:[#allocation2] sm:$0xff]
      %v406 = vld [vmem:[#allocation2 + $0x8] sm:$0xff]
      %v407 = vld [vmem:[#allocation2 + $0x10] sm:$0xff]
      %v408 = vld [vmem:[#allocation2 + $0x18] sm:$0xff]
      %v409 = vld [vmem:[#allocation2 + $0x20] sm:$0xff]
      %v410 = vld [vmem:[#allocation2 + $0x28] sm:$0xff]
      %v411 = vld [vmem:[#allocation2 + $0x30] sm:$0xff]
      %v412 = vld [vmem:[#allocation2 + $0x38] sm:$0xff]
      %v413 = vld [vmem:[#allocation2 + $0x40] sm:$0xf]
      %v414 = vld [vmem:[#allocation2 + $0x48] sm:$0xf]
      %vm415 = vcmask 293888
      %v417 = vsel %vm415, %v404, 0
      %vm419 = vcmask 1043456
      %v421 = vsel %vm419, %v413, 0
      %v424 = vsel %vm419, %v414, 0
      %426 = vmatprep.subr.mxu0 %v406
      %427 = vmatpush1.msra.mxu0 %v405
      %428 = vmatprep.subr.mxu0 %v408
      %429 = vmatpush1.msra.mxu0 %v407
      %430 = vmatprep.subr.mxu0 %v410
      %431 = vmatpush1.msra.mxu0 %v409
      %432 = vmatprep.subr.mxu0 %v412
      %433 = vmatpush1.msra.mxu0 %v411
      %434 = vmatprep.subr.mxu0 %v424
      %435 = vmatpush1.msra.mxu0 %v421
      %436 = vmatprep.subr.mxu0 0.0
      %437 = vmatpush1.msra.mxu0 0.0
      %438 = vmatprep.subr.mxu0 0.0
      %439 = vmatpush1.msra.mxu0 0.0
      %440 = vmatprep.subr.mxu0 0.0
      %441 = vmatpush1.msra.mxu0 0.0
      %442 = vmatprep.subr.mxu0 0.0
      %443 = vmatpush1.msra.mxu0 0.0
      %444 = vmatprep.subr.mxu0 0.0
      %445 = vmatpush1.msra.mxu0 0.0
      %446 = vmatprep.subr.mxu0 0.0
      %447 = vmatpush1.msra.mxu0 0.0
      %448 = vmatprep.subr.mxu0 0.0
      %449 = vmatpush1.msra.mxu0 0.0
      %450 = vmatprep.subr.mxu0 0.0
      %451 = vmatpush1.msra.mxu0 0.0
      %452 = vmatprep.subr.mxu0 0.0
      %453 = vmatpush1.msra.mxu0 0.0
      %454 = vmatprep.subr.mxu0 0.0
      %455 = vmatpush1.msra.mxu0 0.0
      %456 = vmatprep.subr.mxu0 0.0
      %457 = vmatpush1.msra.mxu0 0.0
      %458 = vmatprep.subr.mxu0 0.0
      %459 = vmatpush1.msra.mxu0 0.0
      %460 = vmatprep.subr.mxu0 0.0
      %461 = vmatpush1.msra.mxu0 0.0
      %462 = vmatprep.subr.mxu0 0.0
      %463 = vmatpush1.msra.mxu0 0.0
      %464 = vmatprep.subr.mxu0 0.0
      %465 = vmatpush1.msra.mxu0 0.0
      %466 = vmatprep.subr.mxu0 0.0
      %467 = vmatpush1.msra.mxu0 0.0
      %468 = vmatprep.subr.mxu0 0.0
      %469 = vmatpush1.msra.mxu0 0.0
      %470 = vmatprep.subr.mxu0 0.0
      %471 = vmatpush1.msra.mxu0 0.0
      %472 = vmatprep.subr.mxu0 0.0
      %473 = vmatpush1.msra.mxu0 0.0
      %474 = vmatprep.subr.mxu0 0.0
      %475 = vmatpush1.msra.mxu0 0.0
      %476 = vmatprep.subr.mxu0 0.0
      %477 = vmatpush1.msra.mxu0 0.0
      %478 = vmatprep.subr.mxu0 0.0
      %479 = vmatpush1.msra.mxu0 0.0
      %480 = vmatprep.subr.mxu0 0.0
      %481 = vmatpush1.msra.mxu0 0.0
      %482 = vmatprep.subr.mxu0 0.0
      %483 = vmatpush1.msra.mxu0 0.0
      %484 = vmatprep.subr.mxu0 0.0
      %485 = vmatpush1.msra.mxu0 0.0
      %486 = vmatprep.subr.mxu0 0.0
      %487 = vmatpush1.msra.mxu0 0.0
      %488 = vmatprep.subr.mxu0 0.0
      %489 = vmatpush1.msra.mxu0 0.0
      %490 = vmatprep.mubr.f32.mxu0 0.0
      %491 = vmatmul.mubr.f32.gmra.mrb[0].mxu0 %v417
      %v492 = vpop.f32.mrb[0].mxu0
      %v493 = vadd.f32 0.0, %v492
      %v494 = vpop.f32.mrb[0].mxu0
      %v495 = vadd.f32 0.0, %v494
      %496 = vdwg.mxu0
      %v499 = vcombine.low %v493, %v495
      %501 = vst [vmem:[%s231] sm:$0xff] %v499
      %v502 = vsel %vm419, %v493, 0.0
      %v503 = vsel %vm419, %v495, 0.0
      %v504 = vadd.f32 %v502, %v503
      %505 = vadd.xlane.f32.xlu0 %v504
      %v506 = vpop.xlane.xlu0 %505
      %v507 = vmul.f32 %v506, 0.00390625
      %v508 = vsub.f32 %v493, %v507
      %v509 = vsub.f32 %v495, %v507
      %v510 = vmul.f32 %v508, %v508
      %v511 = vmul.f32 %v509, %v509
      %v512 = vsel %vm419, %v510, 0.0
      %v513 = vsel %vm419, %v511, 0.0
      %v514 = vadd.f32 %v512, %v513
      %515 = vadd.xlane.f32.xlu0 %v514
      %v516 = vpop.xlane.xlu0 %515
      %vm517 = vcmask 7168
      %v518 = vsel %vm517, %v506, %v516
      %vm519 = vcmask 11264
      %520 = vst.msk [vmem:[%s235] sm:$0xf] %vm519, %v518
      %p521 = scmp.lt.s32.totalorder %s17, 1
      %s522 = scalar_select %p521, %s17, 1
      %s523 = smul.addr %s522, 2
      %s524 = smul.addr %s523, 4
      %s525 = scalar_lea.vmem %s4, %s524
      %p526 = scmp.lt.s32.totalorder %s17, 1
      %s527 = scalar_select %p526, %s17, 1
      %s528 = smul.addr %s527, 4
      %s529 = scalar_lea.vmem %s5, %s528
      // Predicated region
      $region37: #{upsample_forward.4} parent=35 // pred_check
        %p530 = pneg %p124
      $region38: #{upsample_forward.4} parent=35 // pred_check_branch
        %532 = sbr.rel (%p530) target = $region40
      $region39: #{upsample_forward.4} parent=35 // pred_region
        _
      $region40: #{upsample_forward.4} parent=35 // pred_fallthru
        _
      // Predicated region
      $region41: #{upsample_forward.4} parent=35 // pred_check
        %p533 = pneg %p150
      $region42: #{upsample_forward.4} parent=35 // pred_check_branch
        %535 = sbr.rel (%p533) target = $region44
      $region43: #{upsample_forward.4} parent=35 // pred_region
        _
      $region44: #{upsample_forward.4} parent=35 // pred_fallthru
        _
    $region36: #{upsample_forward.4} parent=5 // pred_fallthru
      _
    %p536 = scmp.le.s32.totalorder 2, %s12
    // Predicated region
    $region45: #{upsample_forward.4} parent=5 // pred_check
      %p537 = pneg %p536
    $region46: #{upsample_forward.4} parent=5 // pred_check_branch
      %539 = sbr.rel (%p537) target = $region48
    $region47: #{upsample_forward.4} parent=5 // pred_region
      %s540 = ssub.s32 %s12, 2
      // Predicated region
      $region49: #{upsample_forward.4} parent=47 // pred_check
        %p541 = pneg %p130
      $region50: #{upsample_forward.4} parent=47 // pred_check_branch
        %543 = sbr.rel (%p541) target = $region52
      $region51: #{upsample_forward.4} parent=47 // pred_region
        %p544 = scmp.lt.s32.totalorder %s18, 1
        %s545 = scalar_select %p544, %s18, 1
        %s546 = smul.addr %s545, 2
        %s547 = smul.addr %s546, 4
        %s548 = scalar_lea.vmem %s4, %s547
      $region52: #{upsample_forward.4} parent=47 // pred_fallthru
        _
      // Predicated region
      $region53: #{upsample_forward.4} parent=47 // pred_check
        %p549 = pneg %p156
      $region54: #{upsample_forward.4} parent=47 // pred_check_branch
        %551 = sbr.rel (%p549) target = $region56
      $region55: #{upsample_forward.4} parent=47 // pred_region
        %p552 = scmp.lt.s32.totalorder %s18, 1
        %s553 = scalar_select %p552, %s18, 1
        %s554 = smul.addr %s553, 4
        %s555 = scalar_lea.vmem %s5, %s554
      $region56: #{upsample_forward.4} parent=47 // pred_fallthru
        _
    $region48: #{upsample_forward.4} parent=5 // pred_fallthru
      _
  $region6: #{upsample_forward.4} parent=0 // loop_footer
    %s16 = sadd.s32 1, %s12
  $region7: #{upsample_forward.4} parent=0 // loop_footer_branch
    %11 = sbr.rel target = $region3
  $region8: #{upsample_forward.4} parent=0 // loop_exit
    _

// kernel: upsample_forward.5
$region0: #{upsample_forward.5}
  #allocation0 [shape = 'u32[]', space=smem, size = 0x4, offset = 0x4, fixed_abs, tag = 'smem constant byte address 0x4 - core index']
  #allocation1 [shape = 'u32[144,128]{1,0:T(1,128)}', space=vmem, size = 0x12000, scoped, tag = 'internal scratch']
  #allocation2 [shape = 'f32[16,256]{1,0:T(8,128)}', space=vmem, size = 0x4000, scoped, tag = 'scratch operand']
  %s0 = inlined_call_operand.vmem [shape: f32[2,4,256], index: 0, kind: input, shape index: {}]
  %s1 = inlined_call_operand.vmem [shape: f32[4,1], index: 1, kind: input, shape index: {}]
  %s2 = inlined_call_operand.vmem [shape: f32[4,1], index: 2, kind: input, shape index: {}]
  %s3 = inlined_call_operand.vmem [shape: f32[8,16], index: 3, kind: input, shape index: {}]
  %s4 = inlined_call_operand.vmem [shape: f32[8,1], index: 4, kind: input, shape index: {}]
  %s5 = inlined_call_operand.vmem [shape: f32[2,8,256], index: 5, kind: output, shape index: {}]
  %s6 = sld [smem:[#allocation0]]
  $region53: #{upsample_forward.5} parent=0
    _
  %s8 = ssub.s32 1, %s6
  %s9 = scalar_select 0, %s8, %s6
  loop: start=0, step=1, limit=4
  $region2: #{upsample_forward.5} parent=0 // loop_pre_header
    _
  $region3: #{upsample_forward.5} parent=0 // loop_header
    %s11 = sphi 0, %s15
    %p12 = scmp.ge.s32.totalorder %s11, 4
    %s21 = sphi 0, %s23
    %s24 = sphi 0, %s21
    %s25 = sphi 0, %s24
    %s41 = sphi 0, %s25
    %s45 = sphi 0, %s45
    %s47 = sphi 0, %s45
    %s48 = sphi 0, %s47
    %s62 = sphi 0, %s48
    %s66 = sphi 0, %s66
    %s68 = sphi 0, %s66
    %s69 = sphi 0, %s68
    %s83 = sphi 0, %s69
    %s87 = sphi 0, %s87
    %s89 = sphi 0, %s87
    %s90 = sphi 0, %s89
    %s104 = sphi 0, %s90
    %s108 = sphi 0, %s108
    %s110 = sphi 0, %s108
    %s111 = sphi 0, %s110
    %s125 = sphi 0, %s111
    %s131 = sphi 0, %s133
    %s134 = sphi 0, %s131
    %s135 = sphi 0, %s134
    %s151 = sphi 0, %s135
  $region4: #{upsample_forward.5} parent=0 // loop_header_branch
    %14 = sbr.rel (%p12) target = $region8
  $region5: #{upsample_forward.5} parent=0 // loop_body
    %s16 = ssub.s32 %s11, 1
    %s17 = ssub.s32 %s11, 2
    %s18 = sadd.s32 %s11, 1
    %s19 = ssub.s32 %s11, %s18
    %p20 = scmp.eq.s32.totalorder %s19, 0
    %s22 = sadd.s32 %s21, 1
    %s23 = scalar_select %p20, %s21, %s22
    %p26 = pneg %p20
    %p27 = scmp.eq.s32.totalorder %s11, 1
    %p28 = por %p26, %p27
    %p29 = scmp.ne.s32.totalorder %s21, %s24
    %p30 = scmp.eq.s32.totalorder %s11, 0
    %p31 = por %p29, %p30
    %p32 = scmp.ne.s32.totalorder %s21, %s24
    %p33 = scmp.eq.s32.totalorder %s16, 1
    %p34 = por %p32, %p33
    %p35 = scmp.ne.s32.totalorder %s24, %s25
    %p36 = scmp.eq.s32.totalorder %s16, 0
    %p37 = por %p35, %p36
    %p38 = scmp.ne.s32.totalorder %s24, %s25
    %p39 = scmp.eq.s32.totalorder %s17, 1
    %p40 = por %p38, %p39
    %p42 = scmp.ne.s32.totalorder %s25, %s41
    %p43 = scmp.eq.s32.totalorder %s17, 0
    %p44 = por %p42, %p43
    %s46 = sadd.s32 %s45, 1
    %p49 = scmp.eq.s32.totalorder %s11, 1
    %p50 = scmp.ne.s32.totalorder %s45, %s47
    %p51 = scmp.eq.s32.totalorder %s11, 0
    %p52 = por %p50, %p51
    %p53 = scmp.ne.s32.totalorder %s45, %s47
    %p54 = scmp.eq.s32.totalorder %s16, 1
    %p55 = por %p53, %p54
    %p56 = scmp.ne.s32.totalorder %s47, %s48
    %p57 = scmp.eq.s32.totalorder %s16, 0
    %p58 = por %p56, %p57
    %p59 = scmp.ne.s32.totalorder %s47, %s48
    %p60 = scmp.eq.s32.totalorder %s17, 1
    %p61 = por %p59, %p60
    %p63 = scmp.ne.s32.totalorder %s48, %s62
    %p64 = scmp.eq.s32.totalorder %s17, 0
    %p65 = por %p63, %p64
    %s67 = sadd.s32 %s66, 1
    %p70 = scmp.eq.s32.totalorder %s11, 1
    %p71 = scmp.ne.s32.totalorder %s66, %s68
    %p72 = scmp.eq.s32.totalorder %s11, 0
    %p73 = por %p71, %p72
    %p74 = scmp.ne.s32.totalorder %s66, %s68
    %p75 = scmp.eq.s32.totalorder %s16, 1
    %p76 = por %p74, %p75
    %p77 = scmp.ne.s32.totalorder %s68, %s69
    %p78 = scmp.eq.s32.totalorder %s16, 0
    %p79 = por %p77, %p78
    %p80 = scmp.ne.s32.totalorder %s68, %s69
    %p81 = scmp.eq.s32.totalorder %s17, 1
    %p82 = por %p80, %p81
    %p84 = scmp.ne.s32.totalorder %s69, %s83
    %p85 = scmp.eq.s32.totalorder %s17, 0
    %p86 = por %p84, %p85
    %s88 = sadd.s32 %s87, 1
    %p91 = scmp.eq.s32.totalorder %s11, 1
    %p92 = scmp.ne.s32.totalorder %s87, %s89
    %p93 = scmp.eq.s32.totalorder %s11, 0
    %p94 = por %p92, %p93
    %p95 = scmp.ne.s32.totalorder %s87, %s89
    %p96 = scmp.eq.s32.totalorder %s16, 1
    %p97 = por %p95, %p96
    %p98 = scmp.ne.s32.totalorder %s89, %s90
    %p99 = scmp.eq.s32.totalorder %s16, 0
    %p100 = por %p98, %p99
    %p101 = scmp.ne.s32.totalorder %s89, %s90
    %p102 = scmp.eq.s32.totalorder %s17, 1
    %p103 = por %p101, %p102
    %p105 = scmp.ne.s32.totalorder %s90, %s104
    %p106 = scmp.eq.s32.totalorder %s17, 0
    %p107 = por %p105, %p106
    %s109 = sadd.s32 %s108, 1
    %p112 = scmp.eq.s32.totalorder %s11, 1
    %p113 = scmp.ne.s32.totalorder %s108, %s110
    %p114 = scmp.eq.s32.totalorder %s11, 0
    %p115 = por %p113, %p114
    %p116 = scmp.ne.s32.totalorder %s108, %s110
    %p117 = scmp.eq.s32.totalorder %s16, 1
    %p118 = por %p116, %p117
    %p119 = scmp.ne.s32.totalorder %s110, %s111
    %p120 = scmp.eq.s32.totalorder %s16, 0
    %p121 = por %p119, %p120
    %p122 = scmp.ne.s32.totalorder %s110, %s111
    %p123 = scmp.eq.s32.totalorder %s17, 1
    %p124 = por %p122, %p123
    %p126 = scmp.ne.s32.totalorder %s111, %s125
    %p127 = scmp.eq.s32.totalorder %s17, 0
    %p128 = por %p126, %p127
    %s129 = ssub.s32 %s11, %s18
    %p130 = scmp.eq.s32.totalorder %s129, 0
    %s132 = sadd.s32 %s131, 1
    %s133 = scalar_select %p130, %s131, %s132
    %p136 = pneg %p130
    %p137 = scmp.eq.s32.totalorder %s11, 1
    %p138 = por %p136, %p137
    %p139 = scmp.ne.s32.totalorder %s131, %s134
    %p140 = scmp.eq.s32.totalorder %s11, 0
    %p141 = por %p139, %p140
    %p142 = scmp.ne.s32.totalorder %s131, %s134
    %p143 = scmp.eq.s32.totalorder %s16, 1
    %p144 = por %p142, %p143
    %p145 = scmp.ne.s32.totalorder %s134, %s135
    %p146 = scmp.eq.s32.totalorder %s16, 0
    %p147 = por %p145, %p146
    %p148 = scmp.ne.s32.totalorder %s134, %s135
    %p149 = scmp.eq.s32.totalorder %s17, 1
    %p150 = por %p148, %p149
    %p152 = scmp.ne.s32.totalorder %s135, %s151
    %p153 = scmp.eq.s32.totalorder %s17, 0
    %p154 = por %p152, %p153
    %p155 = scmp.le.s32.totalorder 1, %s11
    %p156 = scmp.lt.s32.totalorder %s11, 3
    %p157 = pnand %p155, %p156
    %p158 = pneg %p157
    // Predicated region
    $region9: #{upsample_forward.5} parent=5 // pred_check
      _
    $region10: #{upsample_forward.5} parent=5 // pred_check_branch
      %160 = sbr.rel (%p157) target = $region12
    $region11: #{upsample_forward.5} parent=5 // pred_region
      %s161 = ssub.s32 %s11, 1
      // Predicated region
      $region13: #{upsample_forward.5} parent=11 // pred_check
        %p162 = pneg %p58
      $region14: #{upsample_forward.5} parent=11 // pred_check_branch
        %164 = sbr.rel (%p162) target = $region16
      $region15: #{upsample_forward.5} parent=11 // pred_region
        _
      $region16: #{upsample_forward.5} parent=11 // pred_fallthru
        _
      // Predicated region
      $region17: #{upsample_forward.5} parent=11 // pred_check
        %p165 = pneg %p79
      $region18: #{upsample_forward.5} parent=11 // pred_check_branch
        %167 = sbr.rel (%p165) target = $region20
      $region19: #{upsample_forward.5} parent=11 // pred_region
        _
      $region20: #{upsample_forward.5} parent=11 // pred_fallthru
        _
      // Predicated region
      $region21: #{upsample_forward.5} parent=11 // pred_check
        %p168 = pneg %p100
      $region22: #{upsample_forward.5} parent=11 // pred_check_branch
        %170 = sbr.rel (%p168) target = $region24
      $region23: #{upsample_forward.5} parent=11 // pred_region
        _
      $region24: #{upsample_forward.5} parent=11 // pred_fallthru
        _
      // Predicated region
      $region25: #{upsample_forward.5} parent=11 // pred_check
        %p171 = pneg %p121
      $region26: #{upsample_forward.5} parent=11 // pred_check_branch
        %173 = sbr.rel (%p171) target = $region28
      $region27: #{upsample_forward.5} parent=11 // pred_region
        _
      $region28: #{upsample_forward.5} parent=11 // pred_fallthru
        _
    $region12: #{upsample_forward.5} parent=5 // pred_fallthru
      _
    %p174 = scmp.lt.s32.totalorder %s11, 2
    // Predicated region
    $region29: #{upsample_forward.5} parent=5 // pred_check
      %p175 = pneg %p174
    $region30: #{upsample_forward.5} parent=5 // pred_check_branch
      %177 = sbr.rel (%p175) target = $region32
    $region31: #{upsample_forward.5} parent=5 // pred_region
      // Predicated region
      $region33: #{upsample_forward.5} parent=31 // pred_check
        %p178 = pneg %p31
      $region34: #{upsample_forward.5} parent=31 // pred_check_branch
        %180 = sbr.rel (%p178) target = $region36
      $region35: #{upsample_forward.5} parent=31 // pred_region
        %p181 = scmp.lt.s32.totalorder %s11, 1
        %s182 = scalar_select %p181, %s11, 1
        %s183 = smul.addr %s182, 2
        %s184 = smul.addr %s183, 4
        %s185 = scalar_lea.vmem %s0, %s184
      $region36: #{upsample_forward.5} parent=31 // pred_fallthru
        _
    $region32: #{upsample_forward.5} parent=5 // pred_fallthru
      _
    %p186 = scmp.le.s32.totalorder 1, %s11
    %p187 = scmp.lt.s32.totalorder %s11, 3
    %p188 = pnand %p186, %p187
    %p189 = pneg %p188
    // Predicated region
    $region37: #{upsample_forward.5} parent=5 // pred_check
      _
    $region38: #{upsample_forward.5} parent=5 // pred_check_branch
      %191 = sbr.rel (%p188) target = $region40
    $region39: #{upsample_forward.5} parent=5 // pred_region
      %s192 = ssub.s32 %s11, 1
      %p193 = scmp.lt.s32.totalorder %s16, 1
      %s194 = scalar_select %p193, %s16, 1
      %s195 = smul.addr %s194, 2
      %s196 = smul.addr %s195, 4
      %s197 = scalar_lea.vmem %s0, %s196
      %p198 = pneg %p37
      %p199 = pneg %p34
      %p200 = pneg %p58
      %p201 = pneg %p55
      %p202 = pneg %p79
      %p203 = pneg %p76
      %p204 = pneg %p100
      %p205 = pneg %p97
      %p206 = pneg %p121
      %p207 = pneg %p118
      %p208 = pneg %p147
      %p209 = pneg %p144
      %p210 = scmp.lt.s32.totalorder %s16, 1
      %s211 = scalar_select %p210, %s16, 1
      %s212 = smul.addr %s211, 2
      %s213 = smul.addr %s212, 8
      %s214 = scalar_lea.vmem %s5, %s213
      %p215 = scmp.lt.s32.totalorder %s16, 1
      %s216 = scalar_select %p215, %s16, 1
      %s217 = smul.addr %s216, 2
      %s218 = smul.addr %s217, 4
      %s219 = scalar_lea.vmem %s0, %s218
      %p220 = scmp.lt.s32.totalorder %s16, 1
      %s221 = scalar_select %p220, %s16, 1
      %s222 = smul.addr %s221, 2
      %s223 = smul.addr %s222, 8
      %s224 = scalar_lea.vmem %s5, %s223
      %v225 = vld [vmem:[%s219] sm:$0xff]
      %v226 = vld [vmem:[%s1] sm:$0xf]
      %228 = vset.pattern.permute.xlu0 0
      %229 = vperm.xlu0 %228, %v226
      %v230 = vpop.permute.xlu0 %229
      %v232 = vunpack.c.l.s4 839922192
      %v233 = vunpack.c.0.s8 %v232
      %v234 = vlaneseq
      %v235 = vshrl.u32 %v234, 7
      %v236 = vsub.s32 %v233, %v235
      %v237 = vrot.slane %v230, %v236
      %v239 = vmul.f32 %v225, %v237
      %v240 = vld [vmem:[%s2] sm:$0xf]
      %242 = vset.pattern.permute.xlu0 0
      %243 = vperm.xlu0 %242, %v240
      %v244 = vpop.permute.xlu0 %243
      %v246 = vunpack.c.l.s4 839922192
      %v247 = vunpack.c.0.s8 %v246
      %v248 = vlaneseq
      %v249 = vshrl.u32 %v248, 7
      %v250 = vsub.s32 %v247, %v249
      %v251 = vrot.slane %v244, %v250
      %v253 = vadd.f32 %v239, %v251
      %v254 = vmax.f32 %v253, 0.0
      %v255 = vlaneseq
      %v256 = vand.u32 %v255, 127
      %v257 = vadd.s32 %v256, 128
      %v258 = vand.u32 %v256, 15
      %v259 = vand.u32 %v257, 15
      %v261 = vcombine.high %v254, %v254
      %263 = vst [vmem:[#allocation2] sm:$0xf] %v254
      %264 = vst [vmem:[#allocation2 + $0x8] sm:$0xf] %v261
      %265 = vrot.lane.b32.xlu0 %v254, 127
      %v266 = vpop.permute.xlu0 %265
      %267 = vrot.lane.b32.xlu0 %v261, 127
      %v268 = vpop.permute.xlu0 %267
      %vm269 = vcmp.lt.s32.totalorder %v256, 127
      %v270 = vsel %vm269, %v266, %v268
      %v271 = vsel %vm269, %v268, %v266
      %vm272 = vcmp.lt.s32.totalorder %v258, 15
      %vm273 = vcmp.lt.s32.totalorder %v259, 15
      %v274 = vsel %vm272, %v270, 0.0
      %v275 = vsel %vm273, %v271, 0.0
      %v278 = vrot.slane %v274, 4
      %v279 = vrot.slane %v275, 4
      %282 = vst [vmem:[#allocation2] sm:$0xf0] %v278
      %283 = vst [vmem:[#allocation2 + $0x8] sm:$0xf0] %v279
      %284 = vrot.lane.b32.xlu0 %v254, 112
      %v285 = vpop.permute.xlu0 %284
      %286 = vrot.lane.b32.xlu0 %v261, 112
      %v287 = vpop.permute.xlu0 %286
      %vm288 = vcmp.lt.s32.totalorder %v256, 112
      %v289 = vsel %vm288, %v285, %v287
      %v290 = vsel %vm288, %v287, %v285
      %vm291 = vcmp.lt.s32.totalorder %v256, 240
      %vm292 = vcmp.lt.s32.totalorder %v257, 240
      %v293 = vsel %vm291, %v289, 0.0
      %v294 = vsel %vm292, %v290, 0.0
      %295 = vst [vmem:[#allocation2 + $0x10] sm:$0xf] %v293
      %296 = vst [vmem:[#allocation2 + $0x18] sm:$0xf] %v294
      %297 = vrot.lane.b32.xlu0 %v254, 111
      %v298 = vpop.permute.xlu0 %297
      %299 = vrot.lane.b32.xlu0 %v261, 111
      %v300 = vpop.permute.xlu0 %299
      %vm301 = vcmp.lt.s32.totalorder %v256, 111
      %v302 = vsel %vm301, %v298, %v300
      %v303 = vsel %vm301, %v300, %v298
      %vm304 = vmand %vm291, %vm272
      %vm305 = vmand %vm292, %vm273
      %v306 = vsel %vm304, %v302, 0.0
      %v307 = vsel %vm305, %v303, 0.0
      %v310 = vrot.slane %v306, 4
      %v311 = vrot.slane %v307, 4
      %314 = vst [vmem:[#allocation2 + $0x10] sm:$0xf0] %v310
      %315 = vst [vmem:[#allocation2 + $0x18] sm:$0xf0] %v311
      %v316 = vld [vmem:[%s3] sm:$0xff]
      %v317 = vld [vmem:[#allocation2] sm:$0xff]
      %v318 = vld [vmem:[#allocation2 + $0x8] sm:$0xff]
      %v319 = vld [vmem:[#allocation2 + $0x10] sm:$0xff]
      %v320 = vld [vmem:[#allocation2 + $0x18] sm:$0xff]
      %v321 = vld [vmem:[%s4] sm:$0xff]
      %323 = vset.pattern.permute.xlu0 0
      %324 = vperm.xlu0 %323, %v321
      %v325 = vpop.permute.xlu0 %324
      %vm327 = vcmask 130048
      %v329 = vsel %vm327, %v316, 0
      %331 = vmatprep.subr.mxu0 %v318
      %332 = vmatpush1.msra.mxu0 %v317
      %333 = vmatprep.subr.mxu0 %v320
      %334 = vmatpush1.msra.mxu0 %v319
      %335 = vmatprep.subr.mxu0 0.0
      %336 = vmatpush1.msra.mxu0 0.0
      %337 = vmatprep.subr.mxu0 0.0
      %338 = vmatpush1.msra.mxu0 0.0
      %339 = vmatprep.subr.mxu0 0.0
      %340 = vmatpush1.msra.mxu0 0.0
      %341 = vmatprep.subr.mxu0 0.0
      %342 = vmatpush1.msra.mxu0 0.0
      %343 = vmatprep.subr.mxu0 0.0
      %344 = vmatpush1.msra.mxu0 0.0
      %345 = vmatprep.subr.mxu0 0.0
      %346 = vmatpush1.msra.mxu0 0.0
      %347 = vmatprep.subr.mxu0 0.0
      %348 = vmatpush1.msra.mxu0 0.0
      %349 = vmatprep.subr.mxu0 0.0
      %350 = vmatpush1.msra.mxu0 0.0
      %351 = vmatprep.subr.mxu0 0.0
      %352 = vmatpush1.msra.mxu0 0.0
      %353 = vmatprep.subr.mxu0 0.0
      %354 = vmatpush1.msra.mxu0 0.0
      %355 = vmatprep.subr.mxu0 0.0
      %356 = vmatpush1.msra.mxu0 0.0
      %357 = vmatprep.subr.mxu0 0.0
      %358 = vmatpush1.msra.mxu0 0.0
      %359 = vmatprep.subr.mxu0 0.0
      %360 = vmatpush1.msra.mxu0 0.0
      %361 = vmatprep.subr.mxu0 0.0
      %362 = vmatpush1.msra.mxu0 0.0
      %363 = vmatprep.subr.mxu0 0.0
      %364 = vmatpush1.msra.mxu0 0.0
      %365 = vmatprep.subr.mxu0 0.0
      %366 = vmatpush1.msra.mxu0 0.0
      %367 = vmatprep.subr.mxu0 0.0
      %368 = vmatpush1.msra.mxu0 0.0
      %369 = vmatprep.subr.mxu0 0.0
      %370 = vmatpush1.msra.mxu0 0.0
      %371 = vmatprep.subr.mxu0 0.0
      %372 = vmatpush1.msra.mxu0 0.0
      %373 = vmatprep.subr.mxu0 0.0
      %374 = vmatpush1.msra.mxu0 0.0
      %375 = vmatprep.subr.mxu0 0.0
      %376 = vmatpush1.msra.mxu0 0.0
      %377 = vmatprep.subr.mxu0 0.0
      %378 = vmatpush1.msra.mxu0 0.0
      %379 = vmatprep.subr.mxu0 0.0
      %380 = vmatpush1.msra.mxu0 0.0
      %381 = vmatprep.subr.mxu0 0.0
      %382 = vmatpush1.msra.mxu0 0.0
      %383 = vmatprep.subr.mxu0 0.0
      %384 = vmatpush1.msra.mxu0 0.0
      %385 = vmatprep.subr.mxu0 0.0
      %386 = vmatpush1.msra.mxu0 0.0
      %387 = vmatprep.subr.mxu0 0.0
      %388 = vmatpush1.msra.mxu0 0.0
      %389 = vmatprep.subr.mxu0 0.0
      %390 = vmatpush1.msra.mxu0 0.0
      %391 = vmatprep.subr.mxu0 0.0
      %392 = vmatpush1.msra.mxu0 0.0
      %393 = vmatprep.subr.mxu0 0.0
      %394 = vmatpush1.msra.mxu0 0.0
      %395 = vmatprep.mubr.f32.mxu0 0.0
      %396 = vmatmul.mubr.f32.gmra.mrb[0].mxu0 %v329
      %v397 = vpop.f32.mrb[0].mxu0
      %v398 = vadd.f32 %v325, %v397
      %v399 = vpop.f32.mrb[0].mxu0
      %v400 = vadd.f32 %v325, %v399
      %401 = vdwg.mxu0
      %v402 = vmax.f32 %v398, 0.0
      %v403 = vmax.f32 %v400, 0.0
      %404 = vst [vmem:[%s224] sm:$0xff] %v402
      %405 = vst [vmem:[%s224 + $0x8] sm:$0xff] %v403
      %p406 = scmp.lt.s32.totalorder %s16, 1
      %s407 = scalar_select %p406, %s16, 1
      %s408 = smul.addr %s407, 2
      %s409 = smul.addr %s408, 8
      %s410 = scalar_lea.vmem %s5, %s409
      // Predicated region
      $region41: #{upsample_forward.5} parent=39 // pred_check
        %p411 = pneg %p144
      $region42: #{upsample_forward.5} parent=39 // pred_check_branch
        %413 = sbr.rel (%p411) target = $region44
      $region43: #{upsample_forward.5} parent=39 // pred_region
        _
      $region44: #{upsample_forward.5} parent=39 // pred_fallthru
        _
    $region40: #{upsample_forward.5} parent=5 // pred_fallthru
      _
    %p414 = scmp.le.s32.totalorder 2, %s11
    // Predicated region
    $region45: #{upsample_forward.5} parent=5 // pred_check
      %p415 = pneg %p414
    $region46: #{upsample_forward.5} parent=5 // pred_check_branch
      %417 = sbr.rel (%p415) target = $region48
    $region47: #{upsample_forward.5} parent=5 // pred_region
      %s418 = ssub.s32 %s11, 2
      // Predicated region
      $region49: #{upsample_forward.5} parent=47 // pred_check
        %p419 = pneg %p150
      $region50: #{upsample_forward.5} parent=47 // pred_check_branch
        %421 = sbr.rel (%p419) target = $region52
      $region51: #{upsample_forward.5} parent=47 // pred_region
        %p422 = scmp.lt.s32.totalorder %s17, 1
        %s423 = scalar_select %p422, %s17, 1
        %s424 = smul.addr %s423, 2
        %s425 = smul.addr %s424, 8
        %s426 = scalar_lea.vmem %s5, %s425
      $region52: #{upsample_forward.5} parent=47 // pred_fallthru
        _
    $region48: #{upsample_forward.5} parent=5 // pred_fallthru
      _
  $region6: #{upsample_forward.5} parent=0 // loop_footer
    %s15 = sadd.s32 1, %s11
  $region7: #{upsample_forward.5} parent=0 // loop_footer_branch
    %10 = sbr.rel target = $region3
  $region8: #{upsample_forward.5} parent=0 // loop_exit
    _

// kernel: upsample_forward.3
$region0: #{upsample_forward.3}
  #allocation0 [shape = 'u32[]', space=smem, size = 0x4, offset = 0x4, fixed_abs, tag = 'smem constant byte address 0x4 - core index']
  #allocation1 [shape = 'u32[144,128]{1,0:T(1,128)}', space=vmem, size = 0x12000, scoped, tag = 'internal scratch']
  #allocation2 [shape = 'f32[72,256]{1,0:T(8,128)}', space=vmem, size = 0x12000, scoped, tag = 'scratch operand']
  %s0 = inlined_call_operand.vmem [shape: f32[2,8,256], index: 0, kind: input, shape index: {}]
  %s1 = inlined_call_operand.vmem [shape: f32[4,72], index: 1, kind: input, shape index: {}]
  %s2 = inlined_call_operand.vmem [shape: f32[8,1], index: 2, kind: input, shape index: {}]
  %s3 = inlined_call_operand.vmem [shape: f32[8,1], index: 3, kind: input, shape index: {}]
  %s4 = inlined_call_operand.vmem [shape: f32[2,4,256], index: 4, kind: output, shape index: {0}]
  %s5 = inlined_call_operand.vmem [shape: f32[2,4,2], index: 5, kind: output, shape index: {1}]
  %6 = xla_tuple %s4, %s5
  %s7 = sld [smem:[#allocation0]]
  $region57: #{upsample_forward.3} parent=0
    _
  %s9 = ssub.s32 1, %s7
  %s10 = scalar_select 0, %s9, %s7
  loop: start=0, step=1, limit=4
  $region2: #{upsample_forward.3} parent=0 // loop_pre_header
    _
  $region3: #{upsample_forward.3} parent=0 // loop_header
    %s12 = sphi 0, %s16
    %p13 = scmp.ge.s32.totalorder %s12, 4
    %s22 = sphi 0, %s24
    %s25 = sphi 0, %s22
    %s26 = sphi 0, %s25
    %s42 = sphi 0, %s26
    %s46 = sphi 0, %s46
    %s48 = sphi 0, %s46
    %s49 = sphi 0, %s48
    %s63 = sphi 0, %s49
    %s67 = sphi 0, %s67
    %s69 = sphi 0, %s67
    %s70 = sphi 0, %s69
    %s84 = sphi 0, %s70
    %s88 = sphi 0, %s88
    %s90 = sphi 0, %s88
    %s91 = sphi 0, %s90
    %s105 = sphi 0, %s91
    %s111 = sphi 0, %s113
    %s114 = sphi 0, %s111
    %s115 = sphi 0, %s114
    %s131 = sphi 0, %s115
    %s137 = sphi 0, %s139
    %s140 = sphi 0, %s137
    %s141 = sphi 0, %s140
    %s157 = sphi 0, %s141
  $region4: #{upsample_forward.3} parent=0 // loop_header_branch
    %15 = sbr.rel (%p13) target = $region8
  $region5: #{upsample_forward.3} parent=0 // loop_body
    %s17 = ssub.s32 %s12, 1
    %s18 = ssub.s32 %s12, 2
    %s19 = sadd.s32 %s12, 1
    %s20 = ssub.s32 %s12, %s19
    %p21 = scmp.eq.s32.totalorder %s20, 0
    %s23 = sadd.s32 %s22, 1
    %s24 = scalar_select %p21, %s22, %s23
    %p27 = pneg %p21
    %p28 = scmp.eq.s32.totalorder %s12, 1
    %p29 = por %p27, %p28
    %p30 = scmp.ne.s32.totalorder %s22, %s25
    %p31 = scmp.eq.s32.totalorder %s12, 0
    %p32 = por %p30, %p31
    %p33 = scmp.ne.s32.totalorder %s22, %s25
    %p34 = scmp.eq.s32.totalorder %s17, 1
    %p35 = por %p33, %p34
    %p36 = scmp.ne.s32.totalorder %s25, %s26
    %p37 = scmp.eq.s32.totalorder %s17, 0
    %p38 = por %p36, %p37
    %p39 = scmp.ne.s32.totalorder %s25, %s26
    %p40 = scmp.eq.s32.totalorder %s18, 1
    %p41 = por %p39, %p40
    %p43 = scmp.ne.s32.totalorder %s26, %s42
    %p44 = scmp.eq.s32.totalorder %s18, 0
    %p45 = por %p43, %p44
    %s47 = sadd.s32 %s46, 1
    %p50 = scmp.eq.s32.totalorder %s12, 1
    %p51 = scmp.ne.s32.totalorder %s46, %s48
    %p52 = scmp.eq.s32.totalorder %s12, 0
    %p53 = por %p51, %p52
    %p54 = scmp.ne.s32.totalorder %s46, %s48
    %p55 = scmp.eq.s32.totalorder %s17, 1
    %p56 = por %p54, %p55
    %p57 = scmp.ne.s32.totalorder %s48, %s49
    %p58 = scmp.eq.s32.totalorder %s17, 0
    %p59 = por %p57, %p58
    %p60 = scmp.ne.s32.totalorder %s48, %s49
    %p61 = scmp.eq.s32.totalorder %s18, 1
    %p62 = por %p60, %p61
    %p64 = scmp.ne.s32.totalorder %s49, %s63
    %p65 = scmp.eq.s32.totalorder %s18, 0
    %p66 = por %p64, %p65
    %s68 = sadd.s32 %s67, 1
    %p71 = scmp.eq.s32.totalorder %s12, 1
    %p72 = scmp.ne.s32.totalorder %s67, %s69
    %p73 = scmp.eq.s32.totalorder %s12, 0
    %p74 = por %p72, %p73
    %p75 = scmp.ne.s32.totalorder %s67, %s69
    %p76 = scmp.eq.s32.totalorder %s17, 1
    %p77 = por %p75, %p76
    %p78 = scmp.ne.s32.totalorder %s69, %s70
    %p79 = scmp.eq.s32.totalorder %s17, 0
    %p80 = por %p78, %p79
    %p81 = scmp.ne.s32.totalorder %s69, %s70
    %p82 = scmp.eq.s32.totalorder %s18, 1
    %p83 = por %p81, %p82
    %p85 = scmp.ne.s32.totalorder %s70, %s84
    %p86 = scmp.eq.s32.totalorder %s18, 0
    %p87 = por %p85, %p86
    %s89 = sadd.s32 %s88, 1
    %p92 = scmp.eq.s32.totalorder %s12, 1
    %p93 = scmp.ne.s32.totalorder %s88, %s90
    %p94 = scmp.eq.s32.totalorder %s12, 0
    %p95 = por %p93, %p94
    %p96 = scmp.ne.s32.totalorder %s88, %s90
    %p97 = scmp.eq.s32.totalorder %s17, 1
    %p98 = por %p96, %p97
    %p99 = scmp.ne.s32.totalorder %s90, %s91
    %p100 = scmp.eq.s32.totalorder %s17, 0
    %p101 = por %p99, %p100
    %p102 = scmp.ne.s32.totalorder %s90, %s91
    %p103 = scmp.eq.s32.totalorder %s18, 1
    %p104 = por %p102, %p103
    %p106 = scmp.ne.s32.totalorder %s91, %s105
    %p107 = scmp.eq.s32.totalorder %s18, 0
    %p108 = por %p106, %p107
    %s109 = ssub.s32 %s12, %s19
    %p110 = scmp.eq.s32.totalorder %s109, 0
    %s112 = sadd.s32 %s111, 1
    %s113 = scalar_select %p110, %s111, %s112
    %p116 = pneg %p110
    %p117 = scmp.eq.s32.totalorder %s12, 1
    %p118 = por %p116, %p117
    %p119 = scmp.ne.s32.totalorder %s111, %s114
    %p120 = scmp.eq.s32.totalorder %s12, 0
    %p121 = por %p119, %p120
    %p122 = scmp.ne.s32.totalorder %s111, %s114
    %p123 = scmp.eq.s32.totalorder %s17, 1
    %p124 = por %p122, %p123
    %p125 = scmp.ne.s32.totalorder %s114, %s115
    %p126 = scmp.eq.s32.totalorder %s17, 0
    %p127 = por %p125, %p126
    %p128 = scmp.ne.s32.totalorder %s114, %s115
    %p129 = scmp.eq.s32.totalorder %s18, 1
    %p130 = por %p128, %p129
    %p132 = scmp.ne.s32.totalorder %s115, %s131
    %p133 = scmp.eq.s32.totalorder %s18, 0
    %p134 = por %p132, %p133
    %s135 = ssub.s32 %s12, %s19
    %p136 = scmp.eq.s32.totalorder %s135, 0
    %s138 = sadd.s32 %s137, 1
    %s139 = scalar_select %p136, %s137, %s138
    %p142 = pneg %p136
    %p143 = scmp.eq.s32.totalorder %s12, 1
    %p144 = por %p142, %p143
    %p145 = scmp.ne.s32.totalorder %s137, %s140
    %p146 = scmp.eq.s32.totalorder %s12, 0
    %p147 = por %p145, %p146
    %p148 = scmp.ne.s32.totalorder %s137, %s140
    %p149 = scmp.eq.s32.totalorder %s17, 1
    %p150 = por %p148, %p149
    %p151 = scmp.ne.s32.totalorder %s140, %s141
    %p152 = scmp.eq.s32.totalorder %s17, 0
    %p153 = por %p151, %p152
    %p154 = scmp.ne.s32.totalorder %s140, %s141
    %p155 = scmp.eq.s32.totalorder %s18, 1
    %p156 = por %p154, %p155
    %p158 = scmp.ne.s32.totalorder %s141, %s157
    %p159 = scmp.eq.s32.totalorder %s18, 0
    %p160 = por %p158, %p159
    %p161 = scmp.le.s32.totalorder 1, %s12
    %p162 = scmp.lt.s32.totalorder %s12, 3
    %p163 = pnand %p161, %p162
    %p164 = pneg %p163
    // Predicated region
    $region9: #{upsample_forward.3} parent=5 // pred_check
      _
    $region10: #{upsample_forward.3} parent=5 // pred_check_branch
      %166 = sbr.rel (%p163) target = $region12
    $region11: #{upsample_forward.3} parent=5 // pred_region
      %s167 = ssub.s32 %s12, 1
      // Predicated region
      $region13: #{upsample_forward.3} parent=11 // pred_check
        %p168 = pneg %p59
      $region14: #{upsample_forward.3} parent=11 // pred_check_branch
        %170 = sbr.rel (%p168) target = $region16
      $region15: #{upsample_forward.3} parent=11 // pred_region
        _
      $region16: #{upsample_forward.3} parent=11 // pred_fallthru
        _
      // Predicated region
      $region17: #{upsample_forward.3} parent=11 // pred_check
        %p171 = pneg %p80
      $region18: #{upsample_forward.3} parent=11 // pred_check_branch
        %173 = sbr.rel (%p171) target = $region20
      $region19: #{upsample_forward.3} parent=11 // pred_region
        _
      $region20: #{upsample_forward.3} parent=11 // pred_fallthru
        _
      // Predicated region
      $region21: #{upsample_forward.3} parent=11 // pred_check
        %p174 = pneg %p101
      $region22: #{upsample_forward.3} parent=11 // pred_check_branch
        %176 = sbr.rel (%p174) target = $region24
      $region23: #{upsample_forward.3} parent=11 // pred_region
        _
      $region24: #{upsample_forward.3} parent=11 // pred_fallthru
        _
    $region12: #{upsample_forward.3} parent=5 // pred_fallthru
      _
    %p177 = scmp.lt.s32.totalorder %s12, 2
    // Predicated region
    $region25: #{upsample_forward.3} parent=5 // pred_check
      %p178 = pneg %p177
    $region26: #{upsample_forward.3} parent=5 // pred_check_branch
      %180 = sbr.rel (%p178) target = $region28
    $region27: #{upsample_forward.3} parent=5 // pred_region
      // Predicated region
      $region29: #{upsample_forward.3} parent=27 // pred_check
        %p181 = pneg %p32
      $region30: #{upsample_forward.3} parent=27 // pred_check_branch
        %183 = sbr.rel (%p181) target = $region32
      $region31: #{upsample_forward.3} parent=27 // pred_region
        %p184 = scmp.lt.s32.totalorder %s12, 1
        %s185 = scalar_select %p184, %s12, 1
        %s186 = smul.addr %s185, 2
        %s187 = smul.addr %s186, 8
        %s188 = scalar_lea.vmem %s0, %s187
      $region32: #{upsample_forward.3} parent=27 // pred_fallthru
        _
    $region28: #{upsample_forward.3} parent=5 // pred_fallthru
      _
    %p189 = scmp.le.s32.totalorder 1, %s12
    %p190 = scmp.lt.s32.totalorder %s12, 3
    %p191 = pnand %p189, %p190
    %p192 = pneg %p191
    // Predicated region
    $region33: #{upsample_forward.3} parent=5 // pred_check
      _
    $region34: #{upsample_forward.3} parent=5 // pred_check_branch
      %194 = sbr.rel (%p191) target = $region36
    $region35: #{upsample_forward.3} parent=5 // pred_region
      %s195 = ssub.s32 %s12, 1
      %p196 = scmp.lt.s32.totalorder %s17, 1
      %s197 = scalar_select %p196, %s17, 1
      %s198 = smul.addr %s197, 2
      %s199 = smul.addr %s198, 8
      %s200 = scalar_lea.vmem %s0, %s199
      %p201 = pneg %p38
      %p202 = pneg %p35
      %p203 = pneg %p59
      %p204 = pneg %p56
      %p205 = pneg %p80
      %p206 = pneg %p77
      %p207 = pneg %p101
      %p208 = pneg %p98
      %p209 = pneg %p127
      %p210 = pneg %p124
      %p211 = scmp.lt.s32.totalorder %s17, 1
      %s212 = scalar_select %p211, %s17, 1
      %s213 = smul.addr %s212, 2
      %s214 = smul.addr %s213, 4
      %s215 = scalar_lea.vmem %s4, %s214
      %p216 = pneg %p153
      %p217 = pneg %p150
      %p218 = scmp.lt.s32.totalorder %s17, 1
      %s219 = scalar_select %p218, %s17, 1
      %s220 = smul.addr %s219, 4
      %s221 = scalar_lea.vmem %s5, %s220
      %p222 = scmp.lt.s32.totalorder %s17, 1
      %s223 = scalar_select %p222, %s17, 1
      %s224 = smul.addr %s223, 2
      %s225 = smul.addr %s224, 8
      %s226 = scalar_lea.vmem %s0, %s225
      %p227 = scmp.lt.s32.totalorder %s17, 1
      %s228 = scalar_select %p227, %s17, 1
      %s229 = smul.addr %s228, 2
      %s230 = smul.addr %s229, 4
      %s231 = scalar_lea.vmem %s4, %s230
      %p232 = scmp.lt.s32.totalorder %s17, 1
      %s233 = scalar_select %p232, %s17, 1
      %s234 = smul.addr %s233, 4
      %s235 = scalar_lea.vmem %s5, %s234
      %v236 = vld [vmem:[%s226] sm:$0xff]
      %v237 = vld [vmem:[%s226 + $0x8] sm:$0xff]
      %v238 = vlaneseq
      %v239 = vand.u32 %v238, 127
      %v240 = vadd.s32 %v239, 128
      %v241 = vand.u32 %v239, 15
      %v242 = vand.u32 %v240, 15
      %243 = vrot.lane.b32.xlu0 %v236, 17
      %v244 = vpop.permute.xlu0 %243
      %245 = vrot.lane.b32.xlu0 %v237, 17
      %v246 = vpop.permute.xlu0 %245
      %vm247 = vcmp.lt.s32.totalorder %v239, 17
      %v248 = vsel %vm247, %v244, %v246
      %v249 = vsel %vm247, %v246, %v244
      %vm250 = vcmp.ge.s32.totalorder %v239, 16
      %vm251 = vcmp.ge.s32.totalorder %v240, 16
      %vm252 = vcmp.ge.s32.totalorder %v241, 1
      %vm253 = vcmp.ge.s32.totalorder %v242, 1
      %vm254 = vmand %vm250, %vm252
      %vm255 = vmand %vm251, %vm253
      %v256 = vsel %vm254, %v249, 0.0
      %v257 = vsel %vm255, %v248, 0.0
      %258 = vst [vmem:[#allocation2] sm:$0xff] %v256
      %259 = vst [vmem:[#allocation2 + $0x8] sm:$0xff] %v257
      %260 = vrot.lane.b32.xlu0 %v236, 16
      %v261 = vpop.permute.xlu0 %260
      %262 = vrot.lane.b32.xlu0 %v237, 16
      %v263 = vpop.permute.xlu0 %262
      %vm264 = vcmp.lt.s32.totalorder %v239, 16
      %v265 = vsel %vm264, %v261, %v263
      %v266 = vsel %vm264, %v263, %v261
      %v267 = vsel %vm250, %v266, 0.0
      %v268 = vsel %vm251, %v265, 0.0
      %269 = vst [vmem:[#allocation2 + $0x10] sm:$0xff] %v267
      %270 = vst [vmem:[#allocation2 + $0x18] sm:$0xff] %v268
      %271 = vrot.lane.b32.xlu0 %v236, 15
      %v272 = vpop.permute.xlu0 %271
      %273 = vrot.lane.b32.xlu0 %v237, 15
      %v274 = vpop.permute.xlu0 %273
      %vm275 = vcmp.lt.s32.totalorder %v239, 15
      %v276 = vsel %vm275, %v272, %v274
      %v277 = vsel %vm275, %v274, %v272
      %vm278 = vcmp.lt.s32.totalorder %v241, 15
      %vm279 = vcmp.lt.s32.totalorder %v242, 15
      %vm280 = vmand %vm250, %vm278
      %vm281 = vmand %vm251, %vm279
      %v282 = vsel %vm280, %v277, 0.0
      %v283 = vsel %vm281, %v276, 0.0
      %284 = vst [vmem:[#allocation2 + $0x20] sm:$0xff] %v282
      %285 = vst [vmem:[#allocation2 + $0x28] sm:$0xff] %v283
      %286 = vrot.lane.b32.xlu0 %v236, 1
      %v287 = vpop.permute.xlu0 %286
      %288 = vrot.lane.b32.xlu0 %v237, 1
      %v289 = vpop.permute.xlu0 %288
      %vm290 = vcmp.lt.s32.totalorder %v239, 1
      %v291 = vsel %vm290, %v287, %v289
      %v292 = vsel %vm290, %v289, %v287
      %v293 = vsel %vm252, %v292, 0.0
      %v294 = vsel %vm253, %v291, 0.0
      %295 = vst [vmem:[#allocation2 + $0x30] sm:$0xff] %v293
      %296 = vst [vmem:[#allocation2 + $0x38] sm:$0xff] %v294
      %297 = vst [vmem:[#allocation2 + $0x40] sm:$0xff] %v236
      %298 = vst [vmem:[#allocation2 + $0x48] sm:$0xff] %v237
      %299 = vrot.lane.b32.xlu0 %v236, 127
      %v300 = vpop.permute.xlu0 %299
      %301 = vrot.lane.b32.xlu0 %v237, 127
      %v302 = vpop.permute.xlu0 %301
      %vm303 = vcmp.lt.s32.totalorder %v239, 127
      %v304 = vsel %vm303, %v300, %v302
      %v305 = vsel %vm303, %v302, %v300
      %v306 = vsel %vm278, %v304, 0.0
      %v307 = vsel %vm279, %v305, 0.0
      %308 = vst [vmem:[#allocation2 + $0x50] sm:$0xff] %v306
      %309 = vst [vmem:[#allocation2 + $0x58] sm:$0xff] %v307
      %310 = vrot.lane.b32.xlu0 %v236, 113
      %v311 = vpop.permute.xlu0 %310
      %312 = vrot.lane.b32.xlu0 %v237, 113
      %v313 = vpop.permute.xlu0 %312
      %vm314 = vcmp.lt.s32.totalorder %v239, 113
      %v315 = vsel %vm314, %v311, %v313
      %v316 = vsel %vm314, %v313, %v311
      %vm317 = vcmp.lt.s32.totalorder %v239, 240
      %vm318 = vcmp.lt.s32.totalorder %v240, 240
      %vm319 = vmand %vm317, %vm252
      %vm320 = vmand %vm318, %vm253
      %v321 = vsel %vm319, %v315, 0.0
      %v322 = vsel %vm320, %v316, 0.0
      %323 = vst [vmem:[#allocation2 + $0x60] sm:$0xff] %v321
      %324 = vst [vmem:[#allocation2 + $0x68] sm:$0xff] %v322
      %325 = vrot.lane.b32.xlu0 %v236, 112
      %v326 = vpop.permute.xlu0 %325
      %327 = vrot.lane.b32.xlu0 %v237, 112
      %v328 = vpop.permute.xlu0 %327
      %vm329 = vcmp.lt.s32.totalorder %v239, 112
      %v330 = vsel %vm329, %v326, %v328
      %v331 = vsel %vm329, %v328, %v326
      %v332 = vsel %vm317, %v330, 0.0
      %v333 = vsel %vm318, %v331, 0.0
      %334 = vst [vmem:[#allocation2 + $0x70] sm:$0xff] %v332
      %335 = vst [vmem:[#allocation2 + $0x78] sm:$0xff] %v333
      %336 = vrot.lane.b32.xlu0 %v236, 111
      %v337 = vpop.permute.xlu0 %336
      %338 = vrot.lane.b32.xlu0 %v237, 111
      %v339 = vpop.permute.xlu0 %338
      %vm340 = vcmp.lt.s32.totalorder %v239, 111
      %v341 = vsel %vm340, %v337, %v339
      %v342 = vsel %vm340, %v339, %v337
      %vm343 = vmand %vm317, %vm278
      %vm344 = vmand %vm318, %vm279
      %v345 = vsel %vm343, %v341, 0.0
      %v346 = vsel %vm344, %v342, 0.0
      %347 = vst [vmem:[#allocation2 + $0x80] sm:$0xff] %v345
      %348 = vst [vmem:[#allocation2 + $0x88] sm:$0xff] %v346
      %v349 = vld [vmem:[%s1] sm:$0xf]
      %v350 = vld [vmem:[#allocation2] sm:$0xff]
      %v351 = vld [vmem:[#allocation2 + $0x8] sm:$0xff]
      %v352 = vld [vmem:[#allocation2 + $0x10] sm:$0xff]
      %v353 = vld [vmem:[#allocation2 + $0x18] sm:$0xff]
      %v354 = vld [vmem:[#allocation2 + $0x20] sm:$0xff]
      %v355 = vld [vmem:[#allocation2 + $0x28] sm:$0xff]
      %v356 = vld [vmem:[#allocation2 + $0x30] sm:$0xff]
      %v357 = vld [vmem:[#allocation2 + $0x38] sm:$0xff]
      %v358 = vld [vmem:[#allocation2 + $0x40] sm:$0xff]
      %v359 = vld [vmem:[#allocation2 + $0x48] sm:$0xff]
      %v360 = vld [vmem:[#allocation2 + $0x50] sm:$0xff]
      %v361 = vld [vmem:[#allocation2 + $0x58] sm:$0xff]
      %v362 = vld [vmem:[#allocation2 + $0x60] sm:$0xff]
      %v363 = vld [vmem:[#allocation2 + $0x68] sm:$0xff]
      %v364 = vld [vmem:[#allocation2 + $0x70] sm:$0xff]
      %v365 = vld [vmem:[#allocation2 + $0x78] sm:$0xff]
      %v366 = vld [vmem:[#allocation2 + $0x80] sm:$0xff]
      %v367 = vld [vmem:[#allocation2 + $0x88] sm:$0xff]
      %vm368 = vcmask 588800
      %v370 = vsel %vm368, %v349, 0
      %372 = vmatprep.subr.mxu0 %v351
      %373 = vmatpush1.msra.mxu0 %v350
      %374 = vmatprep.subr.mxu0 %v353
      %375 = vmatpush1.msra.mxu0 %v352
      %376 = vmatprep.subr.mxu0 %v355
      %377 = vmatpush1.msra.mxu0 %v354
      %378 = vmatprep.subr.mxu0 %v357
      %379 = vmatpush1.msra.mxu0 %v356
      %380 = vmatprep.subr.mxu0 %v359
      %381 = vmatpush1.msra.mxu0 %v358
      %382 = vmatprep.subr.mxu0 %v361
      %383 = vmatpush1.msra.mxu0 %v360
      %384 = vmatprep.subr.mxu0 %v363
      %385 = vmatpush1.msra.mxu0 %v362
      %386 = vmatprep.subr.mxu0 %v365
      %387 = vmatpush1.msra.mxu0 %v364
      %388 = vmatprep.subr.mxu0 %v367
      %389 = vmatpush1.msra.mxu0 %v366
      %390 = vmatprep.subr.mxu0 0.0
      %391 = vmatpush1.msra.mxu0 0.0
      %392 = vmatprep.subr.mxu0 0.0
      %393 = vmatpush1.msra.mxu0 0.0
      %394 = vmatprep.subr.mxu0 0.0
      %395 = vmatpush1.msra.mxu0 0.0
      %396 = vmatprep.subr.mxu0 0.0
      %397 = vmatpush1.msra.mxu0 0.0
      %398 = vmatprep.subr.mxu0 0.0
      %399 = vmatpush1.msra.mxu0 0.0
      %400 = vmatprep.subr.mxu0 0.0
      %401 = vmatpush1.msra.mxu0 0.0
      %402 = vmatprep.subr.mxu0 0.0
      %403 = vmatpush1.msra.mxu0 0.0
      %404 = vmatprep.subr.mxu0 0.0
      %405 = vmatpush1.msra.mxu0 0.0
      %406 = vmatprep.subr.mxu0 0.0
      %407 = vmatpush1.msra.mxu0 0.0
      %408 = vmatprep.subr.mxu0 0.0
      %409 = vmatpush1.msra.mxu0 0.0
      %410 = vmatprep.subr.mxu0 0.0
      %411 = vmatpush1.msra.mxu0 0.0
      %412 = vmatprep.subr.mxu0 0.0
      %413 = vmatpush1.msra.mxu0 0.0
      %414 = vmatprep.subr.mxu0 0.0
      %415 = vmatpush1.msra.mxu0 0.0
      %416 = vmatprep.subr.mxu0 0.0
      %417 = vmatpush1.msra.mxu0 0.0
      %418 = vmatprep.subr.mxu0 0.0
      %419 = vmatpush1.msra.mxu0 0.0
      %420 = vmatprep.subr.mxu0 0.0
      %421 = vmatpush1.msra.mxu0 0.0
      %422 = vmatprep.subr.mxu0 0.0
      %423 = vmatpush1.msra.mxu0 0.0
      %424 = vmatprep.subr.mxu0 0.0
      %425 = vmatpush1.msra.mxu0 0.0
      %426 = vmatprep.subr.mxu0 0.0
      %427 = vmatpush1.msra.mxu0 0.0
      %428 = vmatprep.subr.mxu0 0.0
      %429 = vmatpush1.msra.mxu0 0.0
      %430 = vmatprep.subr.mxu0 0.0
      %431 = vmatpush1.msra.mxu0 0.0
      %432 = vmatprep.subr.mxu0 0.0
      %433 = vmatpush1.msra.mxu0 0.0
      %434 = vmatprep.subr.mxu0 0.0
      %435 = vmatpush1.msra.mxu0 0.0
      %436 = vmatprep.mubr.f32.mxu0 0.0
      %437 = vmatmul.mubr.f32.gmra.mrb[0].mxu0 %v370
      %v438 = vpop.f32.mrb[0].mxu0
      %v439 = vadd.f32 0.0, %v438
      %v440 = vpop.f32.mrb[0].mxu0
      %v441 = vadd.f32 0.0, %v440
      %442 = vdwg.mxu0
      %v445 = vcombine.low %v439, %v441
      %447 = vst [vmem:[%s231] sm:$0xff] %v445
      %vm448 = vcmask 1043456
      %v449 = vsel %vm448, %v439, 0.0
      %v450 = vsel %vm448, %v441, 0.0
      %v451 = vadd.f32 %v449, %v450
      %452 = vadd.xlane.f32.xlu0 %v451
      %v453 = vpop.xlane.xlu0 %452
      %v454 = vmul.f32 %v453, 0.00390625
      %v455 = vsub.f32 %v439, %v454
      %v456 = vsub.f32 %v441, %v454
      %v457 = vmul.f32 %v455, %v455
      %v458 = vmul.f32 %v456, %v456
      %v459 = vsel %vm448, %v457, 0.0
      %v460 = vsel %vm448, %v458, 0.0
      %v461 = vadd.f32 %v459, %v460
      %462 = vadd.xlane.f32.xlu0 %v461
      %v463 = vpop.xlane.xlu0 %462
      %vm464 = vcmask 7168
      %v465 = vsel %vm464, %v453, %v463
      %vm466 = vcmask 11264
      %467 = vst.msk [vmem:[%s235] sm:$0xf] %vm466, %v465
      %p468 = scmp.lt.s32.totalorder %s17, 1
      %s469 = scalar_select %p468, %s17, 1
      %s470 = smul.addr %s469, 2
      %s471 = smul.addr %s470, 4
      %s472 = scalar_lea.vmem %s4, %s471
      %p473 = scmp.lt.s32.totalorder %s17, 1
      %s474 = scalar_select %p473, %s17, 1
      %s475 = smul.addr %s474, 4
      %s476 = scalar_lea.vmem %s5, %s475
      // Predicated region
      $region37: #{upsample_forward.3} parent=35 // pred_check
        %p477 = pneg %p124
      $region38: #{upsample_forward.3} parent=35 // pred_check_branch
        %479 = sbr.rel (%p477) target = $region40
      $region39: #{upsample_forward.3} parent=35 // pred_region
        _
      $region40: #{upsample_forward.3} parent=35 // pred_fallthru
        _
      // Predicated region
      $region41: #{upsample_forward.3} parent=35 // pred_check
        %p480 = pneg %p150
      $region42: #{upsample_forward.3} parent=35 // pred_check_branch
        %482 = sbr.rel (%p480) target = $region44
      $region43: #{upsample_forward.3} parent=35 // pred_region
        _
      $region44: #{upsample_forward.3} parent=35 // pred_fallthru
        _
    $region36: #{upsample_forward.3} parent=5 // pred_fallthru
      _
    %p483 = scmp.le.s32.totalorder 2, %s12
    // Predicated region
    $region45: #{upsample_forward.3} parent=5 // pred_check
      %p484 = pneg %p483
    $region46: #{upsample_forward.3} parent=5 // pred_check_branch
      %486 = sbr.rel (%p484) target = $region48
    $region47: #{upsample_forward.3} parent=5 // pred_region
      %s487 = ssub.s32 %s12, 2
      // Predicated region
      $region49: #{upsample_forward.3} parent=47 // pred_check
        %p488 = pneg %p130
      $region50: #{upsample_forward.3} parent=47 // pred_check_branch
        %490 = sbr.rel (%p488) target = $region52
      $region51: #{upsample_forward.3} parent=47 // pred_region
        %p491 = scmp.lt.s32.totalorder %s18, 1
        %s492 = scalar_select %p491, %s18, 1
        %s493 = smul.addr %s492, 2
        %s494 = smul.addr %s493, 4
        %s495 = scalar_lea.vmem %s4, %s494
      $region52: #{upsample_forward.3} parent=47 // pred_fallthru
        _
      // Predicated region
      $region53: #{upsample_forward.3} parent=47 // pred_check
        %p496 = pneg %p156
      $region54: #{upsample_forward.3} parent=47 // pred_check_branch
        %498 = sbr.rel (%p496) target = $region56
      $region55: #{upsample_forward.3} parent=47 // pred_region
        %p499 = scmp.lt.s32.totalorder %s18, 1
        %s500 = scalar_select %p499, %s18, 1
        %s501 = smul.addr %s500, 4
        %s502 = scalar_lea.vmem %s5, %s501
      $region56: #{upsample_forward.3} parent=47 // pred_fallthru
        _
    $region48: #{upsample_forward.3} parent=5 // pred_fallthru
      _
  $region6: #{upsample_forward.3} parent=0 // loop_footer
    %s16 = sadd.s32 1, %s12
  $region7: #{upsample_forward.3} parent=0 // loop_footer_branch
    %11 = sbr.rel target = $region3
  $region8: #{upsample_forward.3} parent=0 // loop_exit
    _

</llo_original>
